<compile_context>
chip_gen: v6e
topology: v6e:2x2x1
jax: 0.10.0
libtpu: 0.0.40
codegen_flags: <defaults>
</compile_context>

<pallas_src>
import functools

import jax
import jax.numpy as jnp
from jax import lax
from jax.experimental import pallas as pl
from jax.experimental.pallas import tpu as pltpu


def _make_kernel(Ch):
    def kernel(p_ref, c_ref, w_ref, hn_ref, cn_ref):
        # p_ref : (Kp, TM)    bf16 im2col patches (+ ones row for bias, zero pad rows)
        # c_ref : (Ch, TM)    f32 previous cell state (channel-major, pixels in lanes)
        # w_ref : (4*Ch, Kp)  bf16 stacked gate weights, gate order [i, f, o, g],
        #                     with the bias folded in as an extra K column
        # hn_ref: (Ch, TM)    next hidden state
        # cn_ref: (Ch, TM)    next cell state

        def gate(idx):
            # Per-gate (Ch,Kp)@(Kp,TM) MXU dot with f32 accumulation.  Per-gate
            # dots keep each accumulator at Ch rows (16 vregs at TM=512) so the
            # peak live vreg set stays well under the 64-entry file (no spills),
            # unlike one fused (4Ch,K) dot.  Bias comes in via the ones row.
            w_g = w_ref[idx * Ch:(idx + 1) * Ch, :]          # static, aligned slice
            return jnp.dot(w_g, p_ref[...],
                           preferred_element_type=jnp.float32)

        # Gate order along the stacked output-channel axis is [i, f, o, g].
        i = jax.nn.sigmoid(gate(0))                          # (Ch, TM) f32
        g = jnp.tanh(gate(3))                                # (Ch, TM) f32
        ig = i * g                                           # i, g dead after this

        f = jax.nn.sigmoid(gate(1))
        c_next = f * c_ref[...] + ig                         # f32 cell update
        cn_ref[...] = c_next.astype(cn_ref.dtype)            # unmasked, lane-dense

        o = jax.nn.sigmoid(gate(2))
        hn_ref[...] = (o * jnp.tanh(c_next)).astype(hn_ref.dtype)

    return kernel


@functools.partial(jax.jit, static_argnames=("kernel_size",))
def conv_lstm_cell(x_nchw, h_nchw, c_nchw, wx, wh, bias, kernel_size=(3, 3)):
    """ConvLSTM cell step.  x/h/c are NCHW; returns (h_next, c_next) in NCHW.

    wx  : (KH, KW, Cin, 4*Ch)  HWIO weights, gate order [i, f, o, g]
    wh  : (KH, KW, Ch,  4*Ch)  HWIO weights (no bias), gate order [i, f, o, g]
    bias: (4*Ch,)              biases for the x-path convs, gate order [i, f, o, g]
    """
    KH, KW = kernel_size
    B, Cin, H, W = x_nchw.shape
    Ch = h_nchw.shape[1]
    C = Cin + Ch
    K0 = KH * KW * C
    # +1 row for the folded bias, then pad up to a multiple of 16 so the bf16
    # patch operand is sublane-pack aligned.
    Kp = ((K0 + 1 + 15) // 16) * 16
    M = B * H * W
    dtype = x_nchw.dtype

    # --- glue: channel-concat + TF-style SAME zero padding (inputs are already
    #     channel-major, so no NHWC activation transposes are needed) ---------
    xh = jnp.concatenate([x_nchw, h_nchw], axis=1)            # (B, C, H, W)
    pad_h, pad_w = KH - 1, KW - 1
    ph0, ph1 = pad_h // 2, pad_h - pad_h // 2
    pw0, pw1 = pad_w // 2, pad_w - pad_w // 2
    xh_p = jnp.pad(xh, ((0, 0), (0, 0), (ph0, ph1), (pw0, pw1)))

    # --- im2col in "pixels-in-lanes" layout, built directly in bf16 ---------
    # Transpose the SMALL padded tensor first, then concat the KH*KW shifted
    # views along axis 0 (avoids transposing / re-writing the 9x-expanded,
    # f32 patch array).  Row ordering: dy-major, dx, then channel — matching
    # the weight reshape below.
    xh_pt = jnp.transpose(xh_p, (1, 0, 2, 3)).astype(jnp.bfloat16)  # (C, B, Hp, Wp)
    taps = [xh_pt[:, :, dy:dy + H, dx:dx + W]
            for dy in range(KH) for dx in range(KW)]          # each (C, B, H, W)
    patches = jnp.concatenate(taps, axis=0).reshape(K0, M)    # bf16 (K0, M)
    patches = jnp.concatenate(
        [patches,
         jnp.ones((1, M), jnp.bfloat16),                      # bias row
         jnp.zeros((Kp - K0 - 1, M), jnp.bfloat16)], axis=0)  # pad rows

    # --- stacked weights (+ bias column) / cell state in kernel layout ------
    w_cat = jnp.concatenate([wx, wh], axis=2)                 # (KH, KW, C, 4Ch)
    w_t = jnp.transpose(w_cat, (3, 0, 1, 2)).reshape(4 * Ch, K0)
    w_t = jnp.concatenate(
        [w_t, bias.reshape(4 * Ch, 1),
         jnp.zeros((4 * Ch, Kp - K0 - 1), w_t.dtype)], axis=1)
    w_t = w_t.astype(jnp.bfloat16)                            # (4Ch, Kp) bf16
    c_t = (jnp.transpose(c_nchw, (1, 0, 2, 3))
           .reshape(Ch, M).astype(jnp.float32))               # (Ch, M) f32

    # --- grid: split the pixel axis only when each block is big enough to
    #     amortize the ~0.35us per-step overhead (single-TC v5e/v6e: G=1 at
    #     small M; a 2-TC v7x only wins when TM per core >= ~1024 lanes). -----
    G = 2 if (M % 256 == 0 and M >= 2048) else 1
    TM = M // G

    kern = _make_kernel(Ch)
    out_shape = (jax.ShapeDtypeStruct((Ch, M), dtype),
                 jax.ShapeDtypeStruct((Ch, M), dtype))

    h2, c2 = pl.pallas_call(
        kern,
        out_shape=out_shape,
        grid_spec=pltpu.PrefetchScalarGridSpec(
            num_scalar_prefetch=0,
            grid=(G,),
            in_specs=[
                pl.BlockSpec((Kp, TM), lambda g: (0, g)),       # patches (bf16)
                pl.BlockSpec((Ch, TM), lambda g: (0, g)),       # c_prev (f32)
                pl.BlockSpec((4 * Ch, Kp), lambda g: (0, 0)),   # weights (resident)
            ],
            out_specs=[
                pl.BlockSpec((Ch, TM), lambda g: (0, g)),       # h_next
                pl.BlockSpec((Ch, TM), lambda g: (0, g)),       # c_next
            ],
        ),
        compiler_params=pltpu.CompilerParams(
            dimension_semantics=("parallel",)),
    )(patches, c_t, w_t)

    # --- glue back to NCHW ---------------------------------------------------
    h_next = jnp.transpose(h2.reshape(Ch, B, H, W), (1, 0, 2, 3))
    c_next = jnp.transpose(c2.reshape(Ch, B, H, W), (1, 0, 2, 3))
    return h_next, c_next


def conv_lstm_cell_ref(x_nchw, h_nchw, c_nchw, wx, wh, bias, kernel_size=(3, 3)):
    """Pure-JAX reference using lax.conv_general_dilated (for verification)."""
    KH, KW = kernel_size
    x = jnp.transpose(x_nchw, (0, 2, 3, 1))
    h = jnp.transpose(h_nchw, (0, 2, 3, 1))
    c = jnp.transpose(c_nchw, (0, 2, 3, 1))
    pad_h, pad_w = KH - 1, KW - 1
    pads = ((pad_h // 2, pad_h - pad_h // 2), (pad_w // 2, pad_w - pad_w // 2))
    dnx = lax.conv_dimension_numbers(x.shape, wx.shape, ("NHWC", "HWIO", "NHWC"))
    dnh = lax.conv_dimension_numbers(h.shape, wh.shape, ("NHWC", "HWIO", "NHWC"))
    z = (lax.conv_general_dilated(x, wx, (1, 1), pads, dimension_numbers=dnx,
                                  precision=lax.Precision.HIGHEST)
         + bias
         + lax.conv_general_dilated(h, wh, (1, 1), pads, dimension_numbers=dnh,
                                    precision=lax.Precision.HIGHEST))
    Ch = h.shape[-1]
    i = jax.nn.sigmoid(z[..., 0 * Ch:1 * Ch])
    f = jax.nn.sigmoid(z[..., 1 * Ch:2 * Ch])
    o = jax.nn.sigmoid(z[..., 2 * Ch:3 * Ch])
    g = jnp.tanh(z[..., 3 * Ch:4 * Ch])
    c_next = f * c + i * g
    h_next = o * jnp.tanh(c_next)
    return (jnp.transpose(h_next, (0, 3, 1, 2)),
            jnp.transpose(c_next, (0, 3, 1, 2)))


if __name__ == "__main__":
    B, Cin, Ch, H, W = 2, 4, 32, 16, 16
    KH, KW = 3, 3

    key = jax.random.PRNGKey(0)
    kx, kh, kc, kwx, kwh, kb = jax.random.split(key, 6)

    x = jax.random.normal(kx, (B, Cin, H, W), jnp.float32)           # NCHW input
    h_prev = jax.random.normal(kh, (B, Ch, H, W), jnp.float32)       # NCHW hidden
    c_prev = jax.random.normal(kc, (B, Ch, H, W), jnp.float32)       # NCHW cell

    # Deterministic parameter init (synthetic; stacked gate order [i, f, o, g]).
    wx = 0.05 * jax.random.normal(kwx, (KH, KW, Cin, 4 * Ch), jnp.float32)
    wh = 0.05 * jax.random.normal(kwh, (KH, KW, Ch, 4 * Ch), jnp.float32)
    bias = 0.05 * jax.random.normal(kb, (4 * Ch,), jnp.float32)

    h_next, c_next = conv_lstm_cell(x, h_prev, c_prev, wx, wh, bias, (KH, KW))
    jax.block_until_ready((h_next, c_next))

    # Reference with the same bf16 operand rounding the kernel's MXU path
    # applies (f32 accumulation in both), so the comparison isolates kernel
    # logic rather than bf16 quantization of x/h/weights/bias.
    rb = lambda a: a.astype(jnp.bfloat16).astype(jnp.float32)
    h_ref, c_ref = conv_lstm_cell_ref(rb(x), rb(h_prev), c_prev,
                                      rb(wx), rb(wh), rb(bias), (KH, KW))
    assert h_next.shape == (B, Ch, H, W) and c_next.shape == (B, Ch, H, W)
    assert jnp.allclose(h_next, h_ref, rtol=1e-2, atol=1e-2)
    assert jnp.allclose(c_next, c_ref, rtol=1e-2, atol=1e-2)

    print("KERNEL_OK")
</pallas_src>

<mosaic_0001>
module attributes {stable_mosaic.version = 11 : i64} {
  func.func @kernel(%arg0: i32, %arg1: memref<336x512xbf16, #tpu.memory_space<vmem>>, %arg2: memref<32x512xf32, #tpu.memory_space<vmem>>, %arg3: memref<128x336xbf16, #tpu.memory_space<vmem>>, %arg4: memref<32x512xf32, #tpu.memory_space<vmem>>, %arg5: memref<32x512xf32, #tpu.memory_space<vmem>>) attributes {dimension_semantics = [#tpu.dimension_semantics<parallel>], iteration_bounds = array<i64: 1>, scalar_prefetch = 0 : i64, scratch_operands = 0 : i64, tpu.core_type = #tpu.core_type<tc>, window_params = [{transform_indices = @transform_0, window_bounds = array<i64: 336, 512>}, {transform_indices = @transform_1, window_bounds = array<i64: 32, 512>}, {pipeline_mode = #tpu.pipeline_mode<synchronous>, transform_indices = @transform_2, window_bounds = array<i64: 128, 336>}, {transform_indices = @transform_3, window_bounds = array<i64: 32, 512>}, {transform_indices = @transform_4, window_bounds = array<i64: 32, 512>}]} {
    %c0 = arith.constant 0 : index
    %c0_0 = arith.constant 0 : index
    %0 = vector.load %arg3[%c0, %c0_0] : memref<128x336xbf16, #tpu.memory_space<vmem>>, vector<32x336xbf16>
    %c0_1 = arith.constant 0 : index
    %c0_2 = arith.constant 0 : index
    %1 = vector.load %arg1[%c0_1, %c0_2] : memref<336x512xbf16, #tpu.memory_space<vmem>>, vector<336x512xbf16>
    %cst = arith.constant dense<0.000000e+00> : vector<32x512xf32>
    %2 = tpu.matmul %0, %1, %cst {dimension_numbers = #tpu.dot_dimension_numbers<[1], [0], [0], [1], [0, 0, 1, 1], [], []>} : vector<32x336xbf16>, vector<336x512xbf16>, vector<32x512xf32> -> vector<32x512xf32>
    %3 = arith.negf %2 : vector<32x512xf32>
    %4 = math.exp %3 : vector<32x512xf32>
    %cst_3 = arith.constant 1.000000e+00 : f32
    %5 = vector.broadcast %cst_3 : f32 to vector<32x512xf32>
    %6 = arith.addf %5, %4 : vector<32x512xf32>
    %7 = arith.divf %5, %6 : vector<32x512xf32>
    %c96 = arith.constant 96 : index
    %c0_4 = arith.constant 0 : index
    %8 = vector.load %arg3[%c96, %c0_4] : memref<128x336xbf16, #tpu.memory_space<vmem>>, vector<32x336xbf16>
    %c0_5 = arith.constant 0 : index
    %c0_6 = arith.constant 0 : index
    %9 = vector.load %arg1[%c0_5, %c0_6] : memref<336x512xbf16, #tpu.memory_space<vmem>>, vector<336x512xbf16>
    %cst_7 = arith.constant dense<0.000000e+00> : vector<32x512xf32>
    %10 = tpu.matmul %8, %9, %cst_7 {dimension_numbers = #tpu.dot_dimension_numbers<[1], [0], [0], [1], [0, 0, 1, 1], [], []>} : vector<32x336xbf16>, vector<336x512xbf16>, vector<32x512xf32> -> vector<32x512xf32>
    %11 = math.tanh %10 : vector<32x512xf32>
    %12 = arith.mulf %7, %11 : vector<32x512xf32>
    %c32 = arith.constant 32 : index
    %c0_8 = arith.constant 0 : index
    %13 = vector.load %arg3[%c32, %c0_8] : memref<128x336xbf16, #tpu.memory_space<vmem>>, vector<32x336xbf16>
    %c0_9 = arith.constant 0 : index
    %c0_10 = arith.constant 0 : index
    %14 = vector.load %arg1[%c0_9, %c0_10] : memref<336x512xbf16, #tpu.memory_space<vmem>>, vector<336x512xbf16>
    %cst_11 = arith.constant dense<0.000000e+00> : vector<32x512xf32>
    %15 = tpu.matmul %13, %14, %cst_11 {dimension_numbers = #tpu.dot_dimension_numbers<[1], [0], [0], [1], [0, 0, 1, 1], [], []>} : vector<32x336xbf16>, vector<336x512xbf16>, vector<32x512xf32> -> vector<32x512xf32>
    %16 = arith.negf %15 : vector<32x512xf32>
    %17 = math.exp %16 : vector<32x512xf32>
    %cst_12 = arith.constant 1.000000e+00 : f32
    %18 = vector.broadcast %cst_12 : f32 to vector<32x512xf32>
    %19 = arith.addf %18, %17 : vector<32x512xf32>
    %20 = arith.divf %18, %19 : vector<32x512xf32>
    %c0_13 = arith.constant 0 : index
    %c0_14 = arith.constant 0 : index
    %21 = vector.load %arg2[%c0_13, %c0_14] : memref<32x512xf32, #tpu.memory_space<vmem>>, vector<32x512xf32>
    %22 = arith.mulf %20, %21 : vector<32x512xf32>
    %23 = arith.addf %22, %12 : vector<32x512xf32>
    %c0_15 = arith.constant 0 : index
    %c0_16 = arith.constant 0 : index
    %24 = vector.load %arg5[%c0_15, %c0_16] : memref<32x512xf32, #tpu.memory_space<vmem>>, vector<32x512xf32>
    tpu.vector_store %arg5[%c0_15, %c0_16], %23 {strides = array<i32>} : memref<32x512xf32, #tpu.memory_space<vmem>>, vector<32x512xf32>,
    %c64 = arith.constant 64 : index
    %c0_17 = arith.constant 0 : index
    %25 = vector.load %arg3[%c64, %c0_17] : memref<128x336xbf16, #tpu.memory_space<vmem>>, vector<32x336xbf16>
    %c0_18 = arith.constant 0 : index
    %c0_19 = arith.constant 0 : index
    %26 = vector.load %arg1[%c0_18, %c0_19] : memref<336x512xbf16, #tpu.memory_space<vmem>>, vector<336x512xbf16>
    %cst_20 = arith.constant dense<0.000000e+00> : vector<32x512xf32>
    %27 = tpu.matmul %25, %26, %cst_20 {dimension_numbers = #tpu.dot_dimension_numbers<[1], [0], [0], [1], [0, 0, 1, 1], [], []>} : vector<32x336xbf16>, vector<336x512xbf16>, vector<32x512xf32> -> vector<32x512xf32>
    %28 = arith.negf %27 : vector<32x512xf32>
    %29 = math.exp %28 : vector<32x512xf32>
    %cst_21 = arith.constant 1.000000e+00 : f32
    %30 = vector.broadcast %cst_21 : f32 to vector<32x512xf32>
    %31 = arith.addf %30, %29 : vector<32x512xf32>
    %32 = arith.divf %30, %31 : vector<32x512xf32>
    %33 = math.tanh %23 : vector<32x512xf32>
    %34 = arith.mulf %32, %33 : vector<32x512xf32>
    %c0_22 = arith.constant 0 : index
    %c0_23 = arith.constant 0 : index
    %35 = vector.load %arg4[%c0_22, %c0_23] : memref<32x512xf32, #tpu.memory_space<vmem>>, vector<32x512xf32>
    tpu.vector_store %arg4[%c0_22, %c0_23], %34 {strides = array<i32>} : memref<32x512xf32, #tpu.memory_space<vmem>>, vector<32x512xf32>,
    return
  }
  func.func @transform_0(%arg0: i32) -> (i32, i32) {
    %c0_i32 = arith.constant 0 : i32
    %c0_i32_0 = arith.constant 0 : i32
    return %c0_i32, %arg0 : i32, i32
  }
  func.func @transform_1(%arg0: i32) -> (i32, i32) {
    %c0_i32 = arith.constant 0 : i32
    %c0_i32_0 = arith.constant 0 : i32
    return %c0_i32, %arg0 : i32, i32
  }
  func.func @transform_2(%arg0: i32) -> (i32, i32) {
    %c0_i32 = arith.constant 0 : i32
    %c0_i32_0 = arith.constant 0 : i32
    %c0_i32_1 = arith.constant 0 : i32
    return %c0_i32, %c0_i32_0 : i32, i32
  }
  func.func @transform_3(%arg0: i32) -> (i32, i32) {
    %c0_i32 = arith.constant 0 : i32
    %c0_i32_0 = arith.constant 0 : i32
    return %c0_i32, %arg0 : i32, i32
  }
  func.func @transform_4(%arg0: i32) -> (i32, i32) {
    %c0_i32 = arith.constant 0 : i32
    %c0_i32_0 = arith.constant 0 : i32
    return %c0_i32, %arg0 : i32, i32
  }
}

</mosaic_0001>

<llo_original>
// kernel: conv_lstm_cell.1
$region0: #{conv_lstm_cell.1}
  #allocation0 [shape = 'u32[]', space=smem, size = 0x4, offset = 0x4, fixed_abs, tag = 'smem constant byte address 0x4 - core index']
  #allocation1 [shape = 'u32[144,128]{1,0:T(1,128)}', space=vmem, size = 0x12000, scoped, tag = 'internal scratch']
  %s0 = inlined_call_operand.vmem [shape: bf16[336,512], index: 0, kind: input, shape index: {}]
  %s1 = inlined_call_operand.vmem [shape: f32[32,512], index: 1, kind: input, shape index: {}]
  %s2 = inlined_call_operand.vmem [shape: bf16[128,336], index: 2, kind: input, shape index: {}]
  %s3 = inlined_call_operand.vmem [shape: f32[32,512], index: 3, kind: output, shape index: {0}]
  %s4 = inlined_call_operand.vmem [shape: f32[32,512], index: 4, kind: output, shape index: {1}]
  %5 = xla_tuple %s3, %s4
  %s6 = sld [smem:[#allocation0]]
  $region30: #{conv_lstm_cell.1} parent=0
    _
  %s8 = ssub.s32 1, %s6
  %s9 = scalar_select 0, %s8, %s6
  // Predicated region
  $region2: #{conv_lstm_cell.1} parent=0 // pred_check
    _
  $region3: #{conv_lstm_cell.1} parent=0 // pred_check_branch
    %11 = sbr.rel (0) target = $region5
  $region4: #{conv_lstm_cell.1} parent=0 // pred_region
    _
  $region5: #{conv_lstm_cell.1} parent=0 // pred_fallthru
    _
  // Predicated region
  $region6: #{conv_lstm_cell.1} parent=0 // pred_check
    _
  $region7: #{conv_lstm_cell.1} parent=0 // pred_check_branch
    %13 = sbr.rel (0) target = $region9
  $region8: #{conv_lstm_cell.1} parent=0 // pred_region
    _
  $region9: #{conv_lstm_cell.1} parent=0 // pred_fallthru
    _
  // Predicated region
  $region10: #{conv_lstm_cell.1} parent=0 // pred_check
    _
  $region11: #{conv_lstm_cell.1} parent=0 // pred_check_branch
    %15 = sbr.rel (0) target = $region13
  $region12: #{conv_lstm_cell.1} parent=0 // pred_region
    _
  $region13: #{conv_lstm_cell.1} parent=0 // pred_fallthru
    _
  %v17 = vld [vmem:[%s2] sm:$0xff]
  %v18 = vld [vmem:[%s2 + $0x8] sm:$0xf]
  %v19 = vld [vmem:[%s2 + $0xc] sm:$0xff]
  %v20 = vld [vmem:[%s2 + $0x14] sm:$0xf]
  %v21 = vld [vmem:[%s2 + $0x18] sm:$0xff]
  %v22 = vld [vmem:[%s2 + $0x20] sm:$0xf]
  %v23 = vld [vmem:[%s2 + $0x24] sm:$0xff]
  %v24 = vld [vmem:[%s2 + $0x2c] sm:$0xf]
  %v25 = vld [vmem:[%s0] sm:$0xff]
  %v26 = vld [vmem:[%s0 + $0x8] sm:$0xff]
  %v27 = vld [vmem:[%s0 + $0x10] sm:$0xff]
  %v28 = vld [vmem:[%s0 + $0x18] sm:$0xff]
  %v29 = vld [vmem:[%s0 + $0x20] sm:$0xff]
  %v30 = vld [vmem:[%s0 + $0x28] sm:$0xff]
  %v31 = vld [vmem:[%s0 + $0x30] sm:$0xff]
  %v32 = vld [vmem:[%s0 + $0x38] sm:$0xff]
  %v33 = vld [vmem:[%s0 + $0x40] sm:$0xff]
  %v34 = vld [vmem:[%s0 + $0x48] sm:$0xff]
  %v35 = vld [vmem:[%s0 + $0x50] sm:$0xff]
  %v36 = vld [vmem:[%s0 + $0x58] sm:$0xff]
  %v37 = vld [vmem:[%s0 + $0x60] sm:$0xff]
  %v38 = vld [vmem:[%s0 + $0x68] sm:$0xff]
  %v39 = vld [vmem:[%s0 + $0x70] sm:$0xff]
  %v40 = vld [vmem:[%s0 + $0x78] sm:$0xff]
  %v41 = vld [vmem:[%s0 + $0x80] sm:$0xff]
  %v42 = vld [vmem:[%s0 + $0x88] sm:$0xff]
  %v43 = vld [vmem:[%s0 + $0x90] sm:$0xff]
  %v44 = vld [vmem:[%s0 + $0x98] sm:$0xff]
  %v45 = vld [vmem:[%s0 + $0xa0] sm:$0xff]
  %v46 = vld [vmem:[%s0 + $0xa8] sm:$0xff]
  %v47 = vld [vmem:[%s0 + $0xb0] sm:$0xff]
  %v48 = vld [vmem:[%s0 + $0xb8] sm:$0xff]
  %v49 = vld [vmem:[%s0 + $0xc0] sm:$0xff]
  %v50 = vld [vmem:[%s0 + $0xc8] sm:$0xff]
  %v51 = vld [vmem:[%s0 + $0xd0] sm:$0xff]
  %v52 = vld [vmem:[%s0 + $0xd8] sm:$0xff]
  %v53 = vld [vmem:[%s0 + $0xe0] sm:$0xff]
  %v54 = vld [vmem:[%s0 + $0xe8] sm:$0xff]
  %v55 = vld [vmem:[%s0 + $0xf0] sm:$0xff]
  %v56 = vld [vmem:[%s0 + $0xf8] sm:$0xff]
  %v57 = vld [vmem:[%s0 + $0x100] sm:$0xff]
  %v58 = vld [vmem:[%s0 + $0x108] sm:$0xff]
  %v59 = vld [vmem:[%s0 + $0x110] sm:$0xff]
  %v60 = vld [vmem:[%s0 + $0x118] sm:$0xff]
  %v61 = vld [vmem:[%s0 + $0x120] sm:$0xff]
  %v62 = vld [vmem:[%s0 + $0x128] sm:$0xff]
  %v63 = vld [vmem:[%s0 + $0x130] sm:$0xff]
  %v64 = vld [vmem:[%s0 + $0x138] sm:$0xff]
  %v65 = vld [vmem:[%s0 + $0x140] sm:$0xff]
  %v66 = vld [vmem:[%s0 + $0x148] sm:$0xff]
  %v67 = vld [vmem:[%s0 + $0x150] sm:$0xff]
  %v68 = vld [vmem:[%s0 + $0x158] sm:$0xff]
  %v69 = vld [vmem:[%s0 + $0x160] sm:$0xff]
  %v70 = vld [vmem:[%s0 + $0x168] sm:$0xff]
  %v71 = vld [vmem:[%s0 + $0x170] sm:$0xff]
  %v72 = vld [vmem:[%s0 + $0x178] sm:$0xff]
  %v73 = vld [vmem:[%s0 + $0x180] sm:$0xff]
  %v74 = vld [vmem:[%s0 + $0x188] sm:$0xff]
  %v75 = vld [vmem:[%s0 + $0x190] sm:$0xff]
  %v76 = vld [vmem:[%s0 + $0x198] sm:$0xff]
  %v77 = vld [vmem:[%s0 + $0x1a0] sm:$0xff]
  %v78 = vld [vmem:[%s0 + $0x1a8] sm:$0xff]
  %v79 = vld [vmem:[%s0 + $0x1b0] sm:$0xff]
  %v80 = vld [vmem:[%s0 + $0x1b8] sm:$0xff]
  %v81 = vld [vmem:[%s0 + $0x1c0] sm:$0xff]
  %v82 = vld [vmem:[%s0 + $0x1c8] sm:$0xff]
  %v83 = vld [vmem:[%s0 + $0x1d0] sm:$0xff]
  %v84 = vld [vmem:[%s0 + $0x1d8] sm:$0xff]
  %v85 = vld [vmem:[%s0 + $0x1e0] sm:$0xff]
  %v86 = vld [vmem:[%s0 + $0x1e8] sm:$0xff]
  %v87 = vld [vmem:[%s0 + $0x1f0] sm:$0xff]
  %v88 = vld [vmem:[%s0 + $0x1f8] sm:$0xff]
  %v89 = vld [vmem:[%s0 + $0x200] sm:$0xff]
  %v90 = vld [vmem:[%s0 + $0x208] sm:$0xff]
  %v91 = vld [vmem:[%s0 + $0x210] sm:$0xff]
  %v92 = vld [vmem:[%s0 + $0x218] sm:$0xff]
  %v93 = vld [vmem:[%s0 + $0x220] sm:$0xff]
  %v94 = vld [vmem:[%s0 + $0x228] sm:$0xff]
  %v95 = vld [vmem:[%s0 + $0x230] sm:$0xff]
  %v96 = vld [vmem:[%s0 + $0x238] sm:$0xff]
  %v97 = vld [vmem:[%s0 + $0x240] sm:$0xff]
  %v98 = vld [vmem:[%s0 + $0x248] sm:$0xff]
  %v99 = vld [vmem:[%s0 + $0x250] sm:$0xff]
  %v100 = vld [vmem:[%s0 + $0x258] sm:$0xff]
  %v101 = vld [vmem:[%s0 + $0x260] sm:$0xff]
  %v102 = vld [vmem:[%s0 + $0x268] sm:$0xff]
  %v103 = vld [vmem:[%s0 + $0x270] sm:$0xff]
  %v104 = vld [vmem:[%s0 + $0x278] sm:$0xff]
  %v105 = vld [vmem:[%s0 + $0x280] sm:$0xff]
  %v106 = vld [vmem:[%s0 + $0x288] sm:$0xff]
  %v107 = vld [vmem:[%s0 + $0x290] sm:$0xff]
  %v108 = vld [vmem:[%s0 + $0x298] sm:$0xff]
  %v117 = vunpack.c.l.b16 %v17
  %v118 = vunpack.c.h.b16 %v17
  %v119 = vunpack.c.l.b16 %v18
  %v120 = vunpack.c.l.b16 %v19
  %v121 = vunpack.c.h.b16 %v19
  %v122 = vunpack.c.l.b16 %v20
  %v123 = vunpack.c.l.b16 %v21
  %v124 = vunpack.c.h.b16 %v21
  %v125 = vunpack.c.l.b16 %v22
  %v126 = vunpack.c.l.b16 %v23
  %v127 = vunpack.c.h.b16 %v23
  %v128 = vunpack.c.l.b16 %v24
  %v129 = vpack.c.b16 %v120, %v117
  %v130 = vpack.c.b16 %v121, %v118
  %v131 = vpack.c.b16 %v122, %v119
  %v132 = vpack.c.b16 %v126, %v123
  %v133 = vpack.c.b16 %v127, %v124
  %v134 = vpack.c.b16 %v128, %v125
  %v223 = vunpack.c.l.b16 %v25
  %v224 = vunpack.c.h.b16 %v25
  %v225 = vunpack.c.l.b16 %v26
  %v226 = vunpack.c.h.b16 %v26
  %v227 = vunpack.c.l.b16 %v27
  %v228 = vunpack.c.h.b16 %v27
  %v229 = vunpack.c.l.b16 %v28
  %v230 = vunpack.c.h.b16 %v28
  %v231 = vunpack.c.l.b16 %v29
  %v232 = vunpack.c.h.b16 %v29
  %v233 = vunpack.c.l.b16 %v30
  %v234 = vunpack.c.h.b16 %v30
  %v235 = vunpack.c.l.b16 %v31
  %v236 = vunpack.c.h.b16 %v31
  %v237 = vunpack.c.l.b16 %v32
  %v238 = vunpack.c.h.b16 %v32
  %v239 = vunpack.c.l.b16 %v33
  %v240 = vunpack.c.h.b16 %v33
  %v241 = vunpack.c.l.b16 %v34
  %v242 = vunpack.c.h.b16 %v34
  %v243 = vunpack.c.l.b16 %v35
  %v244 = vunpack.c.h.b16 %v35
  %v245 = vunpack.c.l.b16 %v36
  %v246 = vunpack.c.h.b16 %v36
  %v247 = vunpack.c.l.b16 %v37
  %v248 = vunpack.c.h.b16 %v37
  %v249 = vunpack.c.l.b16 %v38
  %v250 = vunpack.c.h.b16 %v38
  %v251 = vunpack.c.l.b16 %v39
  %v252 = vunpack.c.h.b16 %v39
  %v253 = vunpack.c.l.b16 %v40
  %v254 = vunpack.c.h.b16 %v40
  %v255 = vunpack.c.l.b16 %v41
  %v256 = vunpack.c.h.b16 %v41
  %v257 = vunpack.c.l.b16 %v42
  %v258 = vunpack.c.h.b16 %v42
  %v259 = vunpack.c.l.b16 %v43
  %v260 = vunpack.c.h.b16 %v43
  %v261 = vunpack.c.l.b16 %v44
  %v262 = vunpack.c.h.b16 %v44
  %v263 = vunpack.c.l.b16 %v45
  %v264 = vunpack.c.h.b16 %v45
  %v265 = vunpack.c.l.b16 %v46
  %v266 = vunpack.c.h.b16 %v46
  %v267 = vunpack.c.l.b16 %v47
  %v268 = vunpack.c.h.b16 %v47
  %v269 = vunpack.c.l.b16 %v48
  %v270 = vunpack.c.h.b16 %v48
  %v271 = vunpack.c.l.b16 %v49
  %v272 = vunpack.c.h.b16 %v49
  %v273 = vunpack.c.l.b16 %v50
  %v274 = vunpack.c.h.b16 %v50
  %v275 = vunpack.c.l.b16 %v51
  %v276 = vunpack.c.h.b16 %v51
  %v277 = vunpack.c.l.b16 %v52
  %v278 = vunpack.c.h.b16 %v52
  %v279 = vunpack.c.l.b16 %v53
  %v280 = vunpack.c.h.b16 %v53
  %v281 = vunpack.c.l.b16 %v54
  %v282 = vunpack.c.h.b16 %v54
  %v283 = vunpack.c.l.b16 %v55
  %v284 = vunpack.c.h.b16 %v55
  %v285 = vunpack.c.l.b16 %v56
  %v286 = vunpack.c.h.b16 %v56
  %v287 = vunpack.c.l.b16 %v57
  %v288 = vunpack.c.h.b16 %v57
  %v289 = vunpack.c.l.b16 %v58
  %v290 = vunpack.c.h.b16 %v58
  %v291 = vunpack.c.l.b16 %v59
  %v292 = vunpack.c.h.b16 %v59
  %v293 = vunpack.c.l.b16 %v60
  %v294 = vunpack.c.h.b16 %v60
  %v295 = vunpack.c.l.b16 %v61
  %v296 = vunpack.c.h.b16 %v61
  %v297 = vunpack.c.l.b16 %v62
  %v298 = vunpack.c.h.b16 %v62
  %v299 = vunpack.c.l.b16 %v63
  %v300 = vunpack.c.h.b16 %v63
  %v301 = vunpack.c.l.b16 %v64
  %v302 = vunpack.c.h.b16 %v64
  %v303 = vunpack.c.l.b16 %v65
  %v304 = vunpack.c.h.b16 %v65
  %v305 = vunpack.c.l.b16 %v66
  %v306 = vunpack.c.h.b16 %v66
  %v307 = vunpack.c.l.b16 %v67
  %v308 = vunpack.c.h.b16 %v67
  %v309 = vunpack.c.l.b16 %v68
  %v310 = vunpack.c.h.b16 %v68
  %v311 = vunpack.c.l.b16 %v69
  %v312 = vunpack.c.h.b16 %v69
  %v313 = vunpack.c.l.b16 %v70
  %v314 = vunpack.c.h.b16 %v70
  %v315 = vunpack.c.l.b16 %v71
  %v316 = vunpack.c.h.b16 %v71
  %v317 = vunpack.c.l.b16 %v72
  %v318 = vunpack.c.h.b16 %v72
  %v319 = vunpack.c.l.b16 %v73
  %v320 = vunpack.c.h.b16 %v73
  %v321 = vunpack.c.l.b16 %v74
  %v322 = vunpack.c.h.b16 %v74
  %v323 = vunpack.c.l.b16 %v75
  %v324 = vunpack.c.h.b16 %v75
  %v325 = vunpack.c.l.b16 %v76
  %v326 = vunpack.c.h.b16 %v76
  %v327 = vunpack.c.l.b16 %v77
  %v328 = vunpack.c.h.b16 %v77
  %v329 = vunpack.c.l.b16 %v78
  %v330 = vunpack.c.h.b16 %v78
  %v331 = vunpack.c.l.b16 %v79
  %v332 = vunpack.c.h.b16 %v79
  %v333 = vunpack.c.l.b16 %v80
  %v334 = vunpack.c.h.b16 %v80
  %v335 = vunpack.c.l.b16 %v81
  %v336 = vunpack.c.h.b16 %v81
  %v337 = vunpack.c.l.b16 %v82
  %v338 = vunpack.c.h.b16 %v82
  %v339 = vunpack.c.l.b16 %v83
  %v340 = vunpack.c.h.b16 %v83
  %v341 = vunpack.c.l.b16 %v84
  %v342 = vunpack.c.h.b16 %v84
  %v343 = vunpack.c.l.b16 %v85
  %v344 = vunpack.c.h.b16 %v85
  %v345 = vunpack.c.l.b16 %v86
  %v346 = vunpack.c.h.b16 %v86
  %v347 = vunpack.c.l.b16 %v87
  %v348 = vunpack.c.h.b16 %v87
  %v349 = vunpack.c.l.b16 %v88
  %v350 = vunpack.c.h.b16 %v88
  %v351 = vunpack.c.l.b16 %v89
  %v352 = vunpack.c.h.b16 %v89
  %v353 = vunpack.c.l.b16 %v90
  %v354 = vunpack.c.h.b16 %v90
  %v355 = vunpack.c.l.b16 %v91
  %v356 = vunpack.c.h.b16 %v91
  %v357 = vunpack.c.l.b16 %v92
  %v358 = vunpack.c.h.b16 %v92
  %v359 = vunpack.c.l.b16 %v93
  %v360 = vunpack.c.h.b16 %v93
  %v361 = vunpack.c.l.b16 %v94
  %v362 = vunpack.c.h.b16 %v94
  %v363 = vunpack.c.l.b16 %v95
  %v364 = vunpack.c.h.b16 %v95
  %v365 = vunpack.c.l.b16 %v96
  %v366 = vunpack.c.h.b16 %v96
  %v367 = vunpack.c.l.b16 %v97
  %v368 = vunpack.c.h.b16 %v97
  %v369 = vunpack.c.l.b16 %v98
  %v370 = vunpack.c.h.b16 %v98
  %v371 = vunpack.c.l.b16 %v99
  %v372 = vunpack.c.h.b16 %v99
  %v373 = vunpack.c.l.b16 %v100
  %v374 = vunpack.c.h.b16 %v100
  %v375 = vunpack.c.l.b16 %v101
  %v376 = vunpack.c.h.b16 %v101
  %v377 = vunpack.c.l.b16 %v102
  %v378 = vunpack.c.h.b16 %v102
  %v379 = vunpack.c.l.b16 %v103
  %v380 = vunpack.c.h.b16 %v103
  %v381 = vunpack.c.l.b16 %v104
  %v382 = vunpack.c.h.b16 %v104
  %v383 = vunpack.c.l.b16 %v105
  %v384 = vunpack.c.h.b16 %v105
  %v385 = vunpack.c.l.b16 %v106
  %v386 = vunpack.c.h.b16 %v106
  %v387 = vunpack.c.l.b16 %v107
  %v388 = vunpack.c.h.b16 %v107
  %v389 = vunpack.c.l.b16 %v108
  %v390 = vunpack.c.h.b16 %v108
  %v391 = vpack.c.b16 %v227, %v223
  %v392 = vpack.c.b16 %v228, %v224
  %v393 = vpack.c.b16 %v229, %v225
  %v394 = vpack.c.b16 %v230, %v226
  %v395 = vpack.c.b16 %v235, %v231
  %v396 = vpack.c.b16 %v236, %v232
  %v397 = vpack.c.b16 %v237, %v233
  %v398 = vpack.c.b16 %v238, %v234
  %v399 = vpack.c.b16 %v243, %v239
  %v400 = vpack.c.b16 %v244, %v240
  %v401 = vpack.c.b16 %v245, %v241
  %v402 = vpack.c.b16 %v246, %v242
  %v403 = vpack.c.b16 %v251, %v247
  %v404 = vpack.c.b16 %v252, %v248
  %v405 = vpack.c.b16 %v253, %v249
  %v406 = vpack.c.b16 %v254, %v250
  %v407 = vpack.c.b16 %v259, %v255
  %v408 = vpack.c.b16 %v260, %v256
  %v409 = vpack.c.b16 %v261, %v257
  %v410 = vpack.c.b16 %v262, %v258
  %v411 = vpack.c.b16 %v267, %v263
  %v412 = vpack.c.b16 %v268, %v264
  %v413 = vpack.c.b16 %v269, %v265
  %v414 = vpack.c.b16 %v270, %v266
  %v415 = vpack.c.b16 %v275, %v271
  %v416 = vpack.c.b16 %v276, %v272
  %v417 = vpack.c.b16 %v277, %v273
  %v418 = vpack.c.b16 %v278, %v274
  %v419 = vpack.c.b16 %v283, %v279
  %v420 = vpack.c.b16 %v284, %v280
  %v421 = vpack.c.b16 %v285, %v281
  %v422 = vpack.c.b16 %v286, %v282
  %v423 = vpack.c.b16 %v291, %v287
  %v424 = vpack.c.b16 %v292, %v288
  %v425 = vpack.c.b16 %v293, %v289
  %v426 = vpack.c.b16 %v294, %v290
  %v427 = vpack.c.b16 %v299, %v295
  %v428 = vpack.c.b16 %v300, %v296
  %v429 = vpack.c.b16 %v301, %v297
  %v430 = vpack.c.b16 %v302, %v298
  %v431 = vpack.c.b16 %v307, %v303
  %v432 = vpack.c.b16 %v308, %v304
  %v433 = vpack.c.b16 %v309, %v305
  %v434 = vpack.c.b16 %v310, %v306
  %v435 = vpack.c.b16 %v315, %v311
  %v436 = vpack.c.b16 %v316, %v312
  %v437 = vpack.c.b16 %v317, %v313
  %v438 = vpack.c.b16 %v318, %v314
  %v439 = vpack.c.b16 %v323, %v319
  %v440 = vpack.c.b16 %v324, %v320
  %v441 = vpack.c.b16 %v325, %v321
  %v442 = vpack.c.b16 %v326, %v322
  %v443 = vpack.c.b16 %v331, %v327
  %v444 = vpack.c.b16 %v332, %v328
  %v445 = vpack.c.b16 %v333, %v329
  %v446 = vpack.c.b16 %v334, %v330
  %v447 = vpack.c.b16 %v339, %v335
  %v448 = vpack.c.b16 %v340, %v336
  %v449 = vpack.c.b16 %v341, %v337
  %v450 = vpack.c.b16 %v342, %v338
  %v451 = vpack.c.b16 %v347, %v343
  %v452 = vpack.c.b16 %v348, %v344
  %v453 = vpack.c.b16 %v349, %v345
  %v454 = vpack.c.b16 %v350, %v346
  %v455 = vpack.c.b16 %v355, %v351
  %v456 = vpack.c.b16 %v356, %v352
  %v457 = vpack.c.b16 %v357, %v353
  %v458 = vpack.c.b16 %v358, %v354
  %v459 = vpack.c.b16 %v363, %v359
  %v460 = vpack.c.b16 %v364, %v360
  %v461 = vpack.c.b16 %v365, %v361
  %v462 = vpack.c.b16 %v366, %v362
  %v463 = vpack.c.b16 %v371, %v367
  %v464 = vpack.c.b16 %v372, %v368
  %v465 = vpack.c.b16 %v373, %v369
  %v466 = vpack.c.b16 %v374, %v370
  %v467 = vpack.c.b16 %v379, %v375
  %v468 = vpack.c.b16 %v380, %v376
  %v469 = vpack.c.b16 %v381, %v377
  %v470 = vpack.c.b16 %v382, %v378
  %v471 = vpack.c.b16 %v387, %v383
  %v472 = vpack.c.b16 %v388, %v384
  %v473 = vpack.c.b16 %v389, %v385
  %v474 = vpack.c.b16 %v390, %v386
  %vm559 = vcmask 654336
  %v561 = vsel %vm559, %v131, 0
  %v564 = vsel %vm559, %v134, 0
  %566 = vmatprep.subr.bf16.mxu0 %v420
  %567 = vmatpush1.bf16.msra.mxu0 %v419
  %568 = vmatprep.subr.bf16.mxu0 %v416
  %569 = vmatpush1.bf16.msra.mxu0 %v415
  %570 = vmatprep.subr.bf16.mxu0 %v412
  %571 = vmatpush1.bf16.msra.mxu0 %v411
  %572 = vmatprep.subr.bf16.mxu0 %v408
  %573 = vmatpush1.bf16.msra.mxu0 %v407
  %574 = vmatprep.subr.bf16.mxu0 %v404
  %575 = vmatpush1.bf16.msra.mxu0 %v403
  %576 = vmatprep.subr.bf16.mxu0 %v400
  %577 = vmatpush1.bf16.msra.mxu0 %v399
  %578 = vmatprep.subr.bf16.mxu0 %v396
  %579 = vmatpush1.bf16.msra.mxu0 %v395
  %580 = vmatprep.subr.bf16.mxu0 %v392
  %581 = vmatpush1.bf16.msra.mxu0 %v391
  %582 = vmatprep.subr.bf16.mxu0 %v452
  %583 = vmatpush2.bf16.msra.mxu0 %v451
  %584 = vmatprep.subr.bf16.mxu0 %v448
  %585 = vmatpush2.bf16.msra.mxu0 %v447
  %586 = vmatprep.subr.bf16.mxu0 %v444
  %587 = vmatpush2.bf16.msra.mxu0 %v443
  %588 = vmatprep.subr.bf16.mxu0 %v440
  %589 = vmatpush2.bf16.msra.mxu0 %v439
  %590 = vmatprep.subr.bf16.mxu0 %v436
  %591 = vmatpush2.bf16.msra.mxu0 %v435
  %592 = vmatprep.subr.bf16.mxu0 %v432
  %593 = vmatpush2.bf16.msra.mxu0 %v431
  %594 = vmatprep.subr.bf16.mxu0 %v428
  %595 = vmatpush2.bf16.msra.mxu0 %v427
  %596 = vmatprep.subr.bf16.mxu0 %v424
  %597 = vmatpush2.bf16.msra.mxu0 %v423
  %598 = vmatprep.mubr.bf16.mxu0 %v130
  %599 = vmatmul.mubr.bf16.gmra.mxu0 %v129
  %v600 = vpop.f32.mrf.mxu0
  %v601 = vadd.f32 0.0, %v600
  %v602 = vpop.f32.mrf.mxu0
  %v603 = vadd.f32 0.0, %v602
  %v604 = vpop.f32.mrf.mxu0
  %v605 = vadd.f32 0.0, %v604
  %v606 = vpop.f32.mrf.mxu0
  %v607 = vadd.f32 0.0, %v606
  %608 = vmatprep.mubr.bf16.mxu0 %v133
  %609 = vmatmul.mubr.bf16.gmra.mxu0 %v132
  %v610 = vpop.f32.mrf.mxu0
  %v611 = vadd.f32 0.0, %v610
  %v612 = vpop.f32.mrf.mxu0
  %v613 = vadd.f32 0.0, %v612
  %v614 = vpop.f32.mrf.mxu0
  %v615 = vadd.f32 0.0, %v614
  %v616 = vpop.f32.mrf.mxu0
  %v617 = vadd.f32 0.0, %v616
  %618 = vdwg.mxu0
  %619 = vmatprep.subr.bf16.mxu0 0
  %620 = vmatpush1.bf16.msra.mxu0 0
  %621 = vmatprep.subr.bf16.mxu0 0
  %622 = vmatpush1.bf16.msra.mxu0 0
  %623 = vmatprep.subr.bf16.mxu0 0
  %624 = vmatpush1.bf16.msra.mxu0 0
  %625 = vmatprep.subr.bf16.mxu0 %v472
  %626 = vmatpush1.bf16.msra.mxu0 %v471
  %627 = vmatprep.subr.bf16.mxu0 %v468
  %628 = vmatpush1.bf16.msra.mxu0 %v467
  %629 = vmatprep.subr.bf16.mxu0 %v464
  %630 = vmatpush1.bf16.msra.mxu0 %v463
  %631 = vmatprep.subr.bf16.mxu0 %v460
  %632 = vmatpush1.bf16.msra.mxu0 %v459
  %633 = vmatprep.subr.bf16.mxu0 %v456
  %634 = vmatpush1.bf16.msra.mxu0 %v455
  %635 = vmatprep.subr.bf16.mxu0 0
  %636 = vmatpush2.bf16.msra.mxu0 0
  %637 = vmatprep.subr.bf16.mxu0 0
  %638 = vmatpush2.bf16.msra.mxu0 0
  %639 = vmatprep.subr.bf16.mxu0 0
  %640 = vmatpush2.bf16.msra.mxu0 0
  %641 = vmatprep.subr.bf16.mxu0 0
  %642 = vmatpush2.bf16.msra.mxu0 0
  %643 = vmatprep.subr.bf16.mxu0 0
  %644 = vmatpush2.bf16.msra.mxu0 0
  %645 = vmatprep.subr.bf16.mxu0 0
  %646 = vmatpush2.bf16.msra.mxu0 0
  %647 = vmatprep.subr.bf16.mxu0 0
  %648 = vmatpush2.bf16.msra.mxu0 0
  %649 = vmatprep.subr.bf16.mxu0 0
  %650 = vmatpush2.bf16.msra.mxu0 0
  %651 = vmatprep.mubr.bf16.mxu0 0
  %652 = vmatmul.mubr.bf16.gmra.mxu0 %v561
  %v653 = vpop.f32.mrf.mxu0
  %v654 = vadd.f32 %v601, %v653
  %v655 = vpop.f32.mrf.mxu0
  %v656 = vadd.f32 %v603, %v655
  %v657 = vpop.f32.mrf.mxu0
  %v658 = vadd.f32 %v605, %v657
  %v659 = vpop.f32.mrf.mxu0
  %v660 = vadd.f32 %v607, %v659
  %661 = vmatprep.mubr.bf16.mxu0 0
  %662 = vmatmul.mubr.bf16.gmra.mxu0 %v564
  %v663 = vpop.f32.mrf.mxu0
  %v664 = vadd.f32 %v611, %v663
  %v665 = vpop.f32.mrf.mxu0
  %v666 = vadd.f32 %v613, %v665
  %v667 = vpop.f32.mrf.mxu0
  %v668 = vadd.f32 %v615, %v667
  %v669 = vpop.f32.mrf.mxu0
  %v670 = vadd.f32 %v617, %v669
  %671 = vdwg.mxu0
  %672 = vmatprep.subr.bf16.mxu0 %v422
  %673 = vmatpush1.bf16.msra.mxu0 %v421
  %674 = vmatprep.subr.bf16.mxu0 %v418
  %675 = vmatpush1.bf16.msra.mxu0 %v417
  %676 = vmatprep.subr.bf16.mxu0 %v414
  %677 = vmatpush1.bf16.msra.mxu0 %v413
  %678 = vmatprep.subr.bf16.mxu0 %v410
  %679 = vmatpush1.bf16.msra.mxu0 %v409
  %680 = vmatprep.subr.bf16.mxu0 %v406
  %681 = vmatpush1.bf16.msra.mxu0 %v405
  %682 = vmatprep.subr.bf16.mxu0 %v402
  %683 = vmatpush1.bf16.msra.mxu0 %v401
  %684 = vmatprep.subr.bf16.mxu0 %v398
  %685 = vmatpush1.bf16.msra.mxu0 %v397
  %686 = vmatprep.subr.bf16.mxu0 %v394
  %687 = vmatpush1.bf16.msra.mxu0 %v393
  %688 = vmatprep.subr.bf16.mxu0 %v454
  %689 = vmatpush2.bf16.msra.mxu0 %v453
  %690 = vmatprep.subr.bf16.mxu0 %v450
  %691 = vmatpush2.bf16.msra.mxu0 %v449
  %692 = vmatprep.subr.bf16.mxu0 %v446
  %693 = vmatpush2.bf16.msra.mxu0 %v445
  %694 = vmatprep.subr.bf16.mxu0 %v442
  %695 = vmatpush2.bf16.msra.mxu0 %v441
  %696 = vmatprep.subr.bf16.mxu0 %v438
  %697 = vmatpush2.bf16.msra.mxu0 %v437
  %698 = vmatprep.subr.bf16.mxu0 %v434
  %699 = vmatpush2.bf16.msra.mxu0 %v433
  %700 = vmatprep.subr.bf16.mxu0 %v430
  %701 = vmatpush2.bf16.msra.mxu0 %v429
  %702 = vmatprep.subr.bf16.mxu0 %v426
  %703 = vmatpush2.bf16.msra.mxu0 %v425
  %704 = vmatprep.mubr.bf16.mxu0 %v130
  %705 = vmatmul.mubr.bf16.gmra.mxu0 %v129
  %v706 = vpop.f32.mrf.mxu0
  %v707 = vadd.f32 0.0, %v706
  %v708 = vpop.f32.mrf.mxu0
  %v709 = vadd.f32 0.0, %v708
  %v710 = vpop.f32.mrf.mxu0
  %v711 = vadd.f32 0.0, %v710
  %v712 = vpop.f32.mrf.mxu0
  %v713 = vadd.f32 0.0, %v712
  %714 = vmatprep.mubr.bf16.mxu0 %v133
  %715 = vmatmul.mubr.bf16.gmra.mxu0 %v132
  %v716 = vpop.f32.mrf.mxu0
  %v717 = vadd.f32 0.0, %v716
  %v718 = vpop.f32.mrf.mxu0
  %v719 = vadd.f32 0.0, %v718
  %v720 = vpop.f32.mrf.mxu0
  %v721 = vadd.f32 0.0, %v720
  %v722 = vpop.f32.mrf.mxu0
  %v723 = vadd.f32 0.0, %v722
  %724 = vdwg.mxu0
  %725 = vmatprep.subr.bf16.mxu0 0
  %726 = vmatpush1.bf16.msra.mxu0 0
  %727 = vmatprep.subr.bf16.mxu0 0
  %728 = vmatpush1.bf16.msra.mxu0 0
  %729 = vmatprep.subr.bf16.mxu0 0
  %730 = vmatpush1.bf16.msra.mxu0 0
  %731 = vmatprep.subr.bf16.mxu0 %v474
  %732 = vmatpush1.bf16.msra.mxu0 %v473
  %733 = vmatprep.subr.bf16.mxu0 %v470
  %734 = vmatpush1.bf16.msra.mxu0 %v469
  %735 = vmatprep.subr.bf16.mxu0 %v466
  %736 = vmatpush1.bf16.msra.mxu0 %v465
  %737 = vmatprep.subr.bf16.mxu0 %v462
  %738 = vmatpush1.bf16.msra.mxu0 %v461
  %739 = vmatprep.subr.bf16.mxu0 %v458
  %740 = vmatpush1.bf16.msra.mxu0 %v457
  %741 = vmatprep.subr.bf16.mxu0 0
  %742 = vmatpush2.bf16.msra.mxu0 0
  %743 = vmatprep.subr.bf16.mxu0 0
  %744 = vmatpush2.bf16.msra.mxu0 0
  %745 = vmatprep.subr.bf16.mxu0 0
  %746 = vmatpush2.bf16.msra.mxu0 0
  %747 = vmatprep.subr.bf16.mxu0 0
  %748 = vmatpush2.bf16.msra.mxu0 0
  %749 = vmatprep.subr.bf16.mxu0 0
  %750 = vmatpush2.bf16.msra.mxu0 0
  %751 = vmatprep.subr.bf16.mxu0 0
  %752 = vmatpush2.bf16.msra.mxu0 0
  %753 = vmatprep.subr.bf16.mxu0 0
  %754 = vmatpush2.bf16.msra.mxu0 0
  %755 = vmatprep.subr.bf16.mxu0 0
  %756 = vmatpush2.bf16.msra.mxu0 0
  %757 = vmatprep.mubr.bf16.mxu0 0
  %758 = vmatmul.mubr.bf16.gmra.mxu0 %v561
  %v759 = vpop.f32.mrf.mxu0
  %v760 = vadd.f32 %v707, %v759
  %v761 = vpop.f32.mrf.mxu0
  %v762 = vadd.f32 %v709, %v761
  %v763 = vpop.f32.mrf.mxu0
  %v764 = vadd.f32 %v711, %v763
  %v765 = vpop.f32.mrf.mxu0
  %v766 = vadd.f32 %v713, %v765
  %767 = vmatprep.mubr.bf16.mxu0 0
  %768 = vmatmul.mubr.bf16.gmra.mxu0 %v564
  %v769 = vpop.f32.mrf.mxu0
  %v770 = vadd.f32 %v717, %v769
  %v771 = vpop.f32.mrf.mxu0
  %v772 = vadd.f32 %v719, %v771
  %v773 = vpop.f32.mrf.mxu0
  %v774 = vadd.f32 %v721, %v773
  %v775 = vpop.f32.mrf.mxu0
  %v776 = vadd.f32 %v723, %v775
  %777 = vdwg.mxu0
  %v778 = vxor.u32 %v654, 2147483648
  %v779 = vxor.u32 %v656, 2147483648
  %v780 = vxor.u32 %v760, 2147483648
  %v781 = vxor.u32 %v762, 2147483648
  %v782 = vxor.u32 %v658, 2147483648
  %v783 = vxor.u32 %v660, 2147483648
  %v784 = vxor.u32 %v764, 2147483648
  %v785 = vxor.u32 %v766, 2147483648
  %v786 = vxor.u32 %v664, 2147483648
  %v787 = vxor.u32 %v666, 2147483648
  %v788 = vxor.u32 %v770, 2147483648
  %v789 = vxor.u32 %v772, 2147483648
  %v790 = vxor.u32 %v668, 2147483648
  %v791 = vxor.u32 %v670, 2147483648
  %v792 = vxor.u32 %v774, 2147483648
  %v793 = vxor.u32 %v776, 2147483648
  %v794 = vmul.f32 %v778, 1.442695
  %v795 = vpow.pop %v794
  %v796 = vmul.f32 %v779, 1.442695
  %v797 = vpow.pop %v796
  %v798 = vmul.f32 %v780, 1.442695
  %v799 = vpow.pop %v798
  %v800 = vmul.f32 %v781, 1.442695
  %v801 = vpow.pop %v800
  %v802 = vmul.f32 %v782, 1.442695
  %v803 = vpow.pop %v802
  %v804 = vmul.f32 %v783, 1.442695
  %v805 = vpow.pop %v804
  %v806 = vmul.f32 %v784, 1.442695
  %v807 = vpow.pop %v806
  %v808 = vmul.f32 %v785, 1.442695
  %v809 = vpow.pop %v808
  %v810 = vmul.f32 %v786, 1.442695
  %v811 = vpow.pop %v810
  %v812 = vmul.f32 %v787, 1.442695
  %v813 = vpow.pop %v812
  %v814 = vmul.f32 %v788, 1.442695
  %v815 = vpow.pop %v814
  %v816 = vmul.f32 %v789, 1.442695
  %v817 = vpow.pop %v816
  %v818 = vmul.f32 %v790, 1.442695
  %v819 = vpow.pop %v818
  %v820 = vmul.f32 %v791, 1.442695
  %v821 = vpow.pop %v820
  %v822 = vmul.f32 %v792, 1.442695
  %v823 = vpow.pop %v822
  %v824 = vmul.f32 %v793, 1.442695
  %v825 = vpow.pop %v824
  %v826 = vadd.f32 %v795, 1.0
  %v827 = vadd.f32 %v797, 1.0
  %v828 = vadd.f32 %v799, 1.0
  %v829 = vadd.f32 %v801, 1.0
  %v830 = vadd.f32 %v803, 1.0
  %v831 = vadd.f32 %v805, 1.0
  %v832 = vadd.f32 %v807, 1.0
  %v833 = vadd.f32 %v809, 1.0
  %v834 = vadd.f32 %v811, 1.0
  %v835 = vadd.f32 %v813, 1.0
  %v836 = vadd.f32 %v815, 1.0
  %v837 = vadd.f32 %v817, 1.0
  %v838 = vadd.f32 %v819, 1.0
  %v839 = vadd.f32 %v821, 1.0
  %v840 = vadd.f32 %v823, 1.0
  %v841 = vadd.f32 %v825, 1.0
  %v842 = vrcp.pop %v826
  %v843 = vmul.f32 1.0, %v842
  %v844 = vrcp.pop %v827
  %v845 = vmul.f32 1.0, %v844
  %v846 = vrcp.pop %v828
  %v847 = vmul.f32 1.0, %v846
  %v848 = vrcp.pop %v829
  %v849 = vmul.f32 1.0, %v848
  %v850 = vrcp.pop %v830
  %v851 = vmul.f32 1.0, %v850
  %v852 = vrcp.pop %v831
  %v853 = vmul.f32 1.0, %v852
  %v854 = vrcp.pop %v832
  %v855 = vmul.f32 1.0, %v854
  %v856 = vrcp.pop %v833
  %v857 = vmul.f32 1.0, %v856
  %v858 = vrcp.pop %v834
  %v859 = vmul.f32 1.0, %v858
  %v860 = vrcp.pop %v835
  %v861 = vmul.f32 1.0, %v860
  %v862 = vrcp.pop %v836
  %v863 = vmul.f32 1.0, %v862
  %v864 = vrcp.pop %v837
  %v865 = vmul.f32 1.0, %v864
  %v866 = vrcp.pop %v838
  %v867 = vmul.f32 1.0, %v866
  %v868 = vrcp.pop %v839
  %v869 = vmul.f32 1.0, %v868
  %v870 = vrcp.pop %v840
  %v871 = vmul.f32 1.0, %v870
  %v872 = vrcp.pop %v841
  %v873 = vmul.f32 1.0, %v872
  %v874 = vld [vmem:[%s2 + $0x90] sm:$0xff]
  %v875 = vld [vmem:[%s2 + $0x98] sm:$0xf]
  %v876 = vld [vmem:[%s2 + $0x9c] sm:$0xff]
  %v877 = vld [vmem:[%s2 + $0xa4] sm:$0xf]
  %v878 = vld [vmem:[%s2 + $0xa8] sm:$0xff]
  %v879 = vld [vmem:[%s2 + $0xb0] sm:$0xf]
  %v880 = vld [vmem:[%s2 + $0xb4] sm:$0xff]
  %v881 = vld [vmem:[%s2 + $0xbc] sm:$0xf]
  %v890 = vunpack.c.l.b16 %v874
  %v891 = vunpack.c.h.b16 %v874
  %v892 = vunpack.c.l.b16 %v875
  %v893 = vunpack.c.l.b16 %v876
  %v894 = vunpack.c.h.b16 %v876
  %v895 = vunpack.c.l.b16 %v877
  %v896 = vunpack.c.l.b16 %v878
  %v897 = vunpack.c.h.b16 %v878
  %v898 = vunpack.c.l.b16 %v879
  %v899 = vunpack.c.l.b16 %v880
  %v900 = vunpack.c.h.b16 %v880
  %v901 = vunpack.c.l.b16 %v881
  %v902 = vpack.c.b16 %v893, %v890
  %v903 = vpack.c.b16 %v894, %v891
  %v904 = vpack.c.b16 %v895, %v892
  %v905 = vpack.c.b16 %v899, %v896
  %v906 = vpack.c.b16 %v900, %v897
  %v907 = vpack.c.b16 %v901, %v898
  %v913 = vsel %vm559, %v904, 0
  %v916 = vsel %vm559, %v907, 0
  %918 = vmatprep.subr.bf16.mxu0 %v420
  %919 = vmatpush1.bf16.msra.mxu0 %v419
  %920 = vmatprep.subr.bf16.mxu0 %v416
  %921 = vmatpush1.bf16.msra.mxu0 %v415
  %922 = vmatprep.subr.bf16.mxu0 %v412
  %923 = vmatpush1.bf16.msra.mxu0 %v411
  %924 = vmatprep.subr.bf16.mxu0 %v408
  %925 = vmatpush1.bf16.msra.mxu0 %v407
  %926 = vmatprep.subr.bf16.mxu0 %v404
  %927 = vmatpush1.bf16.msra.mxu0 %v403
  %928 = vmatprep.subr.bf16.mxu0 %v400
  %929 = vmatpush1.bf16.msra.mxu0 %v399
  %930 = vmatprep.subr.bf16.mxu0 %v396
  %931 = vmatpush1.bf16.msra.mxu0 %v395
  %932 = vmatprep.subr.bf16.mxu0 %v392
  %933 = vmatpush1.bf16.msra.mxu0 %v391
  %934 = vmatprep.subr.bf16.mxu0 %v452
  %935 = vmatpush2.bf16.msra.mxu0 %v451
  %936 = vmatprep.subr.bf16.mxu0 %v448
  %937 = vmatpush2.bf16.msra.mxu0 %v447
  %938 = vmatprep.subr.bf16.mxu0 %v444
  %939 = vmatpush2.bf16.msra.mxu0 %v443
  %940 = vmatprep.subr.bf16.mxu0 %v440
  %941 = vmatpush2.bf16.msra.mxu0 %v439
  %942 = vmatprep.subr.bf16.mxu0 %v436
  %943 = vmatpush2.bf16.msra.mxu0 %v435
  %944 = vmatprep.subr.bf16.mxu0 %v432
  %945 = vmatpush2.bf16.msra.mxu0 %v431
  %946 = vmatprep.subr.bf16.mxu0 %v428
  %947 = vmatpush2.bf16.msra.mxu0 %v427
  %948 = vmatprep.subr.bf16.mxu0 %v424
  %949 = vmatpush2.bf16.msra.mxu0 %v423
  %950 = vmatprep.mubr.bf16.mxu0 %v903
  %951 = vmatmul.mubr.bf16.gmra.mxu0 %v902
  %v952 = vpop.f32.mrf.mxu0
  %v953 = vadd.f32 0.0, %v952
  %v954 = vpop.f32.mrf.mxu0
  %v955 = vadd.f32 0.0, %v954
  %v956 = vpop.f32.mrf.mxu0
  %v957 = vadd.f32 0.0, %v956
  %v958 = vpop.f32.mrf.mxu0
  %v959 = vadd.f32 0.0, %v958
  %960 = vmatprep.mubr.bf16.mxu0 %v906
  %961 = vmatmul.mubr.bf16.gmra.mxu0 %v905
  %v962 = vpop.f32.mrf.mxu0
  %v963 = vadd.f32 0.0, %v962
  %v964 = vpop.f32.mrf.mxu0
  %v965 = vadd.f32 0.0, %v964
  %v966 = vpop.f32.mrf.mxu0
  %v967 = vadd.f32 0.0, %v966
  %v968 = vpop.f32.mrf.mxu0
  %v969 = vadd.f32 0.0, %v968
  %970 = vdwg.mxu0
  %971 = vmatprep.subr.bf16.mxu0 0
  %972 = vmatpush1.bf16.msra.mxu0 0
  %973 = vmatprep.subr.bf16.mxu0 0
  %974 = vmatpush1.bf16.msra.mxu0 0
  %975 = vmatprep.subr.bf16.mxu0 0
  %976 = vmatpush1.bf16.msra.mxu0 0
  %977 = vmatprep.subr.bf16.mxu0 %v472
  %978 = vmatpush1.bf16.msra.mxu0 %v471
  %979 = vmatprep.subr.bf16.mxu0 %v468
  %980 = vmatpush1.bf16.msra.mxu0 %v467
  %981 = vmatprep.subr.bf16.mxu0 %v464
  %982 = vmatpush1.bf16.msra.mxu0 %v463
  %983 = vmatprep.subr.bf16.mxu0 %v460
  %984 = vmatpush1.bf16.msra.mxu0 %v459
  %985 = vmatprep.subr.bf16.mxu0 %v456
  %986 = vmatpush1.bf16.msra.mxu0 %v455
  %987 = vmatprep.subr.bf16.mxu0 0
  %988 = vmatpush2.bf16.msra.mxu0 0
  %989 = vmatprep.subr.bf16.mxu0 0
  %990 = vmatpush2.bf16.msra.mxu0 0
  %991 = vmatprep.subr.bf16.mxu0 0
  %992 = vmatpush2.bf16.msra.mxu0 0
  %993 = vmatprep.subr.bf16.mxu0 0
  %994 = vmatpush2.bf16.msra.mxu0 0
  %995 = vmatprep.subr.bf16.mxu0 0
  %996 = vmatpush2.bf16.msra.mxu0 0
  %997 = vmatprep.subr.bf16.mxu0 0
  %998 = vmatpush2.bf16.msra.mxu0 0
  %999 = vmatprep.subr.bf16.mxu0 0
  %1000 = vmatpush2.bf16.msra.mxu0 0
  %1001 = vmatprep.subr.bf16.mxu0 0
  %1002 = vmatpush2.bf16.msra.mxu0 0
  %1003 = vmatprep.mubr.bf16.mxu0 0
  %1004 = vmatmul.mubr.bf16.gmra.mxu0 %v913
  %v1005 = vpop.f32.mrf.mxu0
  %v1006 = vadd.f32 %v953, %v1005
  %v1007 = vpop.f32.mrf.mxu0
  %v1008 = vadd.f32 %v955, %v1007
  %v1009 = vpop.f32.mrf.mxu0
  %v1010 = vadd.f32 %v957, %v1009
  %v1011 = vpop.f32.mrf.mxu0
  %v1012 = vadd.f32 %v959, %v1011
  %1013 = vmatprep.mubr.bf16.mxu0 0
  %1014 = vmatmul.mubr.bf16.gmra.mxu0 %v916
  %v1015 = vpop.f32.mrf.mxu0
  %v1016 = vadd.f32 %v963, %v1015
  %v1017 = vpop.f32.mrf.mxu0
  %v1018 = vadd.f32 %v965, %v1017
  %v1019 = vpop.f32.mrf.mxu0
  %v1020 = vadd.f32 %v967, %v1019
  %v1021 = vpop.f32.mrf.mxu0
  %v1022 = vadd.f32 %v969, %v1021
  %1023 = vdwg.mxu0
  %1024 = vmatprep.subr.bf16.mxu0 %v422
  %1025 = vmatpush1.bf16.msra.mxu0 %v421
  %1026 = vmatprep.subr.bf16.mxu0 %v418
  %1027 = vmatpush1.bf16.msra.mxu0 %v417
  %1028 = vmatprep.subr.bf16.mxu0 %v414
  %1029 = vmatpush1.bf16.msra.mxu0 %v413
  %1030 = vmatprep.subr.bf16.mxu0 %v410
  %1031 = vmatpush1.bf16.msra.mxu0 %v409
  %1032 = vmatprep.subr.bf16.mxu0 %v406
  %1033 = vmatpush1.bf16.msra.mxu0 %v405
  %1034 = vmatprep.subr.bf16.mxu0 %v402
  %1035 = vmatpush1.bf16.msra.mxu0 %v401
  %1036 = vmatprep.subr.bf16.mxu0 %v398
  %1037 = vmatpush1.bf16.msra.mxu0 %v397
  %1038 = vmatprep.subr.bf16.mxu0 %v394
  %1039 = vmatpush1.bf16.msra.mxu0 %v393
  %1040 = vmatprep.subr.bf16.mxu0 %v454
  %1041 = vmatpush2.bf16.msra.mxu0 %v453
  %1042 = vmatprep.subr.bf16.mxu0 %v450
  %1043 = vmatpush2.bf16.msra.mxu0 %v449
  %1044 = vmatprep.subr.bf16.mxu0 %v446
  %1045 = vmatpush2.bf16.msra.mxu0 %v445
  %1046 = vmatprep.subr.bf16.mxu0 %v442
  %1047 = vmatpush2.bf16.msra.mxu0 %v441
  %1048 = vmatprep.subr.bf16.mxu0 %v438
  %1049 = vmatpush2.bf16.msra.mxu0 %v437
  %1050 = vmatprep.subr.bf16.mxu0 %v434
  %1051 = vmatpush2.bf16.msra.mxu0 %v433
  %1052 = vmatprep.subr.bf16.mxu0 %v430
  %1053 = vmatpush2.bf16.msra.mxu0 %v429
  %1054 = vmatprep.subr.bf16.mxu0 %v426
  %1055 = vmatpush2.bf16.msra.mxu0 %v425
  %1056 = vmatprep.mubr.bf16.mxu0 %v903
  %1057 = vmatmul.mubr.bf16.gmra.mxu0 %v902
  %v1058 = vpop.f32.mrf.mxu0
  %v1059 = vadd.f32 0.0, %v1058
  %v1060 = vpop.f32.mrf.mxu0
  %v1061 = vadd.f32 0.0, %v1060
  %v1062 = vpop.f32.mrf.mxu0
  %v1063 = vadd.f32 0.0, %v1062
  %v1064 = vpop.f32.mrf.mxu0
  %v1065 = vadd.f32 0.0, %v1064
  %1066 = vmatprep.mubr.bf16.mxu0 %v906
  %1067 = vmatmul.mubr.bf16.gmra.mxu0 %v905
  %v1068 = vpop.f32.mrf.mxu0
  %v1069 = vadd.f32 0.0, %v1068
  %v1070 = vpop.f32.mrf.mxu0
  %v1071 = vadd.f32 0.0, %v1070
  %v1072 = vpop.f32.mrf.mxu0
  %v1073 = vadd.f32 0.0, %v1072
  %v1074 = vpop.f32.mrf.mxu0
  %v1075 = vadd.f32 0.0, %v1074
  %1076 = vdwg.mxu0
  %1077 = vmatprep.subr.bf16.mxu0 0
  %1078 = vmatpush1.bf16.msra.mxu0 0
  %1079 = vmatprep.subr.bf16.mxu0 0
  %1080 = vmatpush1.bf16.msra.mxu0 0
  %1081 = vmatprep.subr.bf16.mxu0 0
  %1082 = vmatpush1.bf16.msra.mxu0 0
  %1083 = vmatprep.subr.bf16.mxu0 %v474
  %1084 = vmatpush1.bf16.msra.mxu0 %v473
  %1085 = vmatprep.subr.bf16.mxu0 %v470
  %1086 = vmatpush1.bf16.msra.mxu0 %v469
  %1087 = vmatprep.subr.bf16.mxu0 %v466
  %1088 = vmatpush1.bf16.msra.mxu0 %v465
  %1089 = vmatprep.subr.bf16.mxu0 %v462
  %1090 = vmatpush1.bf16.msra.mxu0 %v461
  %1091 = vmatprep.subr.bf16.mxu0 %v458
  %1092 = vmatpush1.bf16.msra.mxu0 %v457
  %1093 = vmatprep.subr.bf16.mxu0 0
  %1094 = vmatpush2.bf16.msra.mxu0 0
  %1095 = vmatprep.subr.bf16.mxu0 0
  %1096 = vmatpush2.bf16.msra.mxu0 0
  %1097 = vmatprep.subr.bf16.mxu0 0
  %1098 = vmatpush2.bf16.msra.mxu0 0
  %1099 = vmatprep.subr.bf16.mxu0 0
  %1100 = vmatpush2.bf16.msra.mxu0 0
  %1101 = vmatprep.subr.bf16.mxu0 0
  %1102 = vmatpush2.bf16.msra.mxu0 0
  %1103 = vmatprep.subr.bf16.mxu0 0
  %1104 = vmatpush2.bf16.msra.mxu0 0
  %1105 = vmatprep.subr.bf16.mxu0 0
  %1106 = vmatpush2.bf16.msra.mxu0 0
  %1107 = vmatprep.subr.bf16.mxu0 0
  %1108 = vmatpush2.bf16.msra.mxu0 0
  %1109 = vmatprep.mubr.bf16.mxu0 0
  %1110 = vmatmul.mubr.bf16.gmra.mxu0 %v913
  %v1111 = vpop.f32.mrf.mxu0
  %v1112 = vadd.f32 %v1059, %v1111
  %v1113 = vpop.f32.mrf.mxu0
  %v1114 = vadd.f32 %v1061, %v1113
  %v1115 = vpop.f32.mrf.mxu0
  %v1116 = vadd.f32 %v1063, %v1115
  %v1117 = vpop.f32.mrf.mxu0
  %v1118 = vadd.f32 %v1065, %v1117
  %1119 = vmatprep.mubr.bf16.mxu0 0
  %1120 = vmatmul.mubr.bf16.gmra.mxu0 %v916
  %v1121 = vpop.f32.mrf.mxu0
  %v1122 = vadd.f32 %v1069, %v1121
  %v1123 = vpop.f32.mrf.mxu0
  %v1124 = vadd.f32 %v1071, %v1123
  %v1125 = vpop.f32.mrf.mxu0
  %v1126 = vadd.f32 %v1073, %v1125
  %v1127 = vpop.f32.mrf.mxu0
  %v1128 = vadd.f32 %v1075, %v1127
  %1129 = vdwg.mxu0
  %v1130 = vtanh.pop %v1006
  %v1131 = vtanh.pop %v1008
  %v1132 = vtanh.pop %v1112
  %v1133 = vtanh.pop %v1114
  %v1134 = vtanh.pop %v1010
  %v1135 = vtanh.pop %v1012
  %v1136 = vtanh.pop %v1116
  %v1137 = vtanh.pop %v1118
  %v1138 = vtanh.pop %v1016
  %v1139 = vtanh.pop %v1018
  %v1140 = vtanh.pop %v1122
  %v1141 = vtanh.pop %v1124
  %v1142 = vtanh.pop %v1020
  %v1143 = vtanh.pop %v1022
  %v1144 = vtanh.pop %v1126
  %v1145 = vtanh.pop %v1128
  %v1146 = vmul.f32 %v843, %v1130
  %v1147 = vmul.f32 %v845, %v1131
  %v1148 = vmul.f32 %v847, %v1132
  %v1149 = vmul.f32 %v849, %v1133
  %v1150 = vmul.f32 %v851, %v1134
  %v1151 = vmul.f32 %v853, %v1135
  %v1152 = vmul.f32 %v855, %v1136
  %v1153 = vmul.f32 %v857, %v1137
  %v1154 = vmul.f32 %v859, %v1138
  %v1155 = vmul.f32 %v861, %v1139
  %v1156 = vmul.f32 %v863, %v1140
  %v1157 = vmul.f32 %v865, %v1141
  %v1158 = vmul.f32 %v867, %v1142
  %v1159 = vmul.f32 %v869, %v1143
  %v1160 = vmul.f32 %v871, %v1144
  %v1161 = vmul.f32 %v873, %v1145
  %v1162 = vld [vmem:[%s2 + $0x30] sm:$0xff]
  %v1163 = vld [vmem:[%s2 + $0x38] sm:$0xf]
  %v1164 = vld [vmem:[%s2 + $0x3c] sm:$0xff]
  %v1165 = vld [vmem:[%s2 + $0x44] sm:$0xf]
  %v1166 = vld [vmem:[%s2 + $0x48] sm:$0xff]
  %v1167 = vld [vmem:[%s2 + $0x50] sm:$0xf]
  %v1168 = vld [vmem:[%s2 + $0x54] sm:$0xff]
  %v1169 = vld [vmem:[%s2 + $0x5c] sm:$0xf]
  %v1178 = vunpack.c.l.b16 %v1162
  %v1179 = vunpack.c.h.b16 %v1162
  %v1180 = vunpack.c.l.b16 %v1163
  %v1181 = vunpack.c.l.b16 %v1164
  %v1182 = vunpack.c.h.b16 %v1164
  %v1183 = vunpack.c.l.b16 %v1165
  %v1184 = vunpack.c.l.b16 %v1166
  %v1185 = vunpack.c.h.b16 %v1166
  %v1186 = vunpack.c.l.b16 %v1167
  %v1187 = vunpack.c.l.b16 %v1168
  %v1188 = vunpack.c.h.b16 %v1168
  %v1189 = vunpack.c.l.b16 %v1169
  %v1190 = vpack.c.b16 %v1181, %v1178
  %v1191 = vpack.c.b16 %v1182, %v1179
  %v1192 = vpack.c.b16 %v1183, %v1180
  %v1193 = vpack.c.b16 %v1187, %v1184
  %v1194 = vpack.c.b16 %v1188, %v1185
  %v1195 = vpack.c.b16 %v1189, %v1186
  %v1201 = vsel %vm559, %v1192, 0
  %v1204 = vsel %vm559, %v1195, 0
  %1206 = vmatprep.subr.bf16.mxu0 %v420
  %1207 = vmatpush1.bf16.msra.mxu0 %v419
  %1208 = vmatprep.subr.bf16.mxu0 %v416
  %1209 = vmatpush1.bf16.msra.mxu0 %v415
  %1210 = vmatprep.subr.bf16.mxu0 %v412
  %1211 = vmatpush1.bf16.msra.mxu0 %v411
  %1212 = vmatprep.subr.bf16.mxu0 %v408
  %1213 = vmatpush1.bf16.msra.mxu0 %v407
  %1214 = vmatprep.subr.bf16.mxu0 %v404
  %1215 = vmatpush1.bf16.msra.mxu0 %v403
  %1216 = vmatprep.subr.bf16.mxu0 %v400
  %1217 = vmatpush1.bf16.msra.mxu0 %v399
  %1218 = vmatprep.subr.bf16.mxu0 %v396
  %1219 = vmatpush1.bf16.msra.mxu0 %v395
  %1220 = vmatprep.subr.bf16.mxu0 %v392
  %1221 = vmatpush1.bf16.msra.mxu0 %v391
  %1222 = vmatprep.subr.bf16.mxu0 %v452
  %1223 = vmatpush2.bf16.msra.mxu0 %v451
  %1224 = vmatprep.subr.bf16.mxu0 %v448
  %1225 = vmatpush2.bf16.msra.mxu0 %v447
  %1226 = vmatprep.subr.bf16.mxu0 %v444
  %1227 = vmatpush2.bf16.msra.mxu0 %v443
  %1228 = vmatprep.subr.bf16.mxu0 %v440
  %1229 = vmatpush2.bf16.msra.mxu0 %v439
  %1230 = vmatprep.subr.bf16.mxu0 %v436
  %1231 = vmatpush2.bf16.msra.mxu0 %v435
  %1232 = vmatprep.subr.bf16.mxu0 %v432
  %1233 = vmatpush2.bf16.msra.mxu0 %v431
  %1234 = vmatprep.subr.bf16.mxu0 %v428
  %1235 = vmatpush2.bf16.msra.mxu0 %v427
  %1236 = vmatprep.subr.bf16.mxu0 %v424
  %1237 = vmatpush2.bf16.msra.mxu0 %v423
  %1238 = vmatprep.mubr.bf16.mxu0 %v1191
  %1239 = vmatmul.mubr.bf16.gmra.mxu0 %v1190
  %v1240 = vpop.f32.mrf.mxu0
  %v1241 = vadd.f32 0.0, %v1240
  %v1242 = vpop.f32.mrf.mxu0
  %v1243 = vadd.f32 0.0, %v1242
  %v1244 = vpop.f32.mrf.mxu0
  %v1245 = vadd.f32 0.0, %v1244
  %v1246 = vpop.f32.mrf.mxu0
  %v1247 = vadd.f32 0.0, %v1246
  %1248 = vmatprep.mubr.bf16.mxu0 %v1194
  %1249 = vmatmul.mubr.bf16.gmra.mxu0 %v1193
  %v1250 = vpop.f32.mrf.mxu0
  %v1251 = vadd.f32 0.0, %v1250
  %v1252 = vpop.f32.mrf.mxu0
  %v1253 = vadd.f32 0.0, %v1252
  %v1254 = vpop.f32.mrf.mxu0
  %v1255 = vadd.f32 0.0, %v1254
  %v1256 = vpop.f32.mrf.mxu0
  %v1257 = vadd.f32 0.0, %v1256
  %1258 = vdwg.mxu0
  %1259 = vmatprep.subr.bf16.mxu0 0
  %1260 = vmatpush1.bf16.msra.mxu0 0
  %1261 = vmatprep.subr.bf16.mxu0 0
  %1262 = vmatpush1.bf16.msra.mxu0 0
  %1263 = vmatprep.subr.bf16.mxu0 0
  %1264 = vmatpush1.bf16.msra.mxu0 0
  %1265 = vmatprep.subr.bf16.mxu0 %v472
  %1266 = vmatpush1.bf16.msra.mxu0 %v471
  %1267 = vmatprep.subr.bf16.mxu0 %v468
  %1268 = vmatpush1.bf16.msra.mxu0 %v467
  %1269 = vmatprep.subr.bf16.mxu0 %v464
  %1270 = vmatpush1.bf16.msra.mxu0 %v463
  %1271 = vmatprep.subr.bf16.mxu0 %v460
  %1272 = vmatpush1.bf16.msra.mxu0 %v459
  %1273 = vmatprep.subr.bf16.mxu0 %v456
  %1274 = vmatpush1.bf16.msra.mxu0 %v455
  %1275 = vmatprep.subr.bf16.mxu0 0
  %1276 = vmatpush2.bf16.msra.mxu0 0
  %1277 = vmatprep.subr.bf16.mxu0 0
  %1278 = vmatpush2.bf16.msra.mxu0 0
  %1279 = vmatprep.subr.bf16.mxu0 0
  %1280 = vmatpush2.bf16.msra.mxu0 0
  %1281 = vmatprep.subr.bf16.mxu0 0
  %1282 = vmatpush2.bf16.msra.mxu0 0
  %1283 = vmatprep.subr.bf16.mxu0 0
  %1284 = vmatpush2.bf16.msra.mxu0 0
  %1285 = vmatprep.subr.bf16.mxu0 0
  %1286 = vmatpush2.bf16.msra.mxu0 0
  %1287 = vmatprep.subr.bf16.mxu0 0
  %1288 = vmatpush2.bf16.msra.mxu0 0
  %1289 = vmatprep.subr.bf16.mxu0 0
  %1290 = vmatpush2.bf16.msra.mxu0 0
  %1291 = vmatprep.mubr.bf16.mxu0 0
  %1292 = vmatmul.mubr.bf16.gmra.mxu0 %v1201
  %v1293 = vpop.f32.mrf.mxu0
  %v1294 = vadd.f32 %v1241, %v1293
  %v1295 = vpop.f32.mrf.mxu0
  %v1296 = vadd.f32 %v1243, %v1295
  %v1297 = vpop.f32.mrf.mxu0
  %v1298 = vadd.f32 %v1245, %v1297
  %v1299 = vpop.f32.mrf.mxu0
  %v1300 = vadd.f32 %v1247, %v1299
  %1301 = vmatprep.mubr.bf16.mxu0 0
  %1302 = vmatmul.mubr.bf16.gmra.mxu0 %v1204
  %v1303 = vpop.f32.mrf.mxu0
  %v1304 = vadd.f32 %v1251, %v1303
  %v1305 = vpop.f32.mrf.mxu0
  %v1306 = vadd.f32 %v1253, %v1305
  %v1307 = vpop.f32.mrf.mxu0
  %v1308 = vadd.f32 %v1255, %v1307
  %v1309 = vpop.f32.mrf.mxu0
  %v1310 = vadd.f32 %v1257, %v1309
  %1311 = vdwg.mxu0
  %1312 = vmatprep.subr.bf16.mxu0 %v422
  %1313 = vmatpush1.bf16.msra.mxu0 %v421
  %1314 = vmatprep.subr.bf16.mxu0 %v418
  %1315 = vmatpush1.bf16.msra.mxu0 %v417
  %1316 = vmatprep.subr.bf16.mxu0 %v414
  %1317 = vmatpush1.bf16.msra.mxu0 %v413
  %1318 = vmatprep.subr.bf16.mxu0 %v410
  %1319 = vmatpush1.bf16.msra.mxu0 %v409
  %1320 = vmatprep.subr.bf16.mxu0 %v406
  %1321 = vmatpush1.bf16.msra.mxu0 %v405
  %1322 = vmatprep.subr.bf16.mxu0 %v402
  %1323 = vmatpush1.bf16.msra.mxu0 %v401
  %1324 = vmatprep.subr.bf16.mxu0 %v398
  %1325 = vmatpush1.bf16.msra.mxu0 %v397
  %1326 = vmatprep.subr.bf16.mxu0 %v394
  %1327 = vmatpush1.bf16.msra.mxu0 %v393
  %1328 = vmatprep.subr.bf16.mxu0 %v454
  %1329 = vmatpush2.bf16.msra.mxu0 %v453
  %1330 = vmatprep.subr.bf16.mxu0 %v450
  %1331 = vmatpush2.bf16.msra.mxu0 %v449
  %1332 = vmatprep.subr.bf16.mxu0 %v446
  %1333 = vmatpush2.bf16.msra.mxu0 %v445
  %1334 = vmatprep.subr.bf16.mxu0 %v442
  %1335 = vmatpush2.bf16.msra.mxu0 %v441
  %1336 = vmatprep.subr.bf16.mxu0 %v438
  %1337 = vmatpush2.bf16.msra.mxu0 %v437
  %1338 = vmatprep.subr.bf16.mxu0 %v434
  %1339 = vmatpush2.bf16.msra.mxu0 %v433
  %1340 = vmatprep.subr.bf16.mxu0 %v430
  %1341 = vmatpush2.bf16.msra.mxu0 %v429
  %1342 = vmatprep.subr.bf16.mxu0 %v426
  %1343 = vmatpush2.bf16.msra.mxu0 %v425
  %1344 = vmatprep.mubr.bf16.mxu0 %v1191
  %1345 = vmatmul.mubr.bf16.gmra.mxu0 %v1190
  %v1346 = vpop.f32.mrf.mxu0
  %v1347 = vadd.f32 0.0, %v1346
  %v1348 = vpop.f32.mrf.mxu0
  %v1349 = vadd.f32 0.0, %v1348
  %v1350 = vpop.f32.mrf.mxu0
  %v1351 = vadd.f32 0.0, %v1350
  %v1352 = vpop.f32.mrf.mxu0
  %v1353 = vadd.f32 0.0, %v1352
  %1354 = vmatprep.mubr.bf16.mxu0 %v1194
  %1355 = vmatmul.mubr.bf16.gmra.mxu0 %v1193
  %v1356 = vpop.f32.mrf.mxu0
  %v1357 = vadd.f32 0.0, %v1356
  %v1358 = vpop.f32.mrf.mxu0
  %v1359 = vadd.f32 0.0, %v1358
  %v1360 = vpop.f32.mrf.mxu0
  %v1361 = vadd.f32 0.0, %v1360
  %v1362 = vpop.f32.mrf.mxu0
  %v1363 = vadd.f32 0.0, %v1362
  %1364 = vdwg.mxu0
  %1365 = vmatprep.subr.bf16.mxu0 0
  %1366 = vmatpush1.bf16.msra.mxu0 0
  %1367 = vmatprep.subr.bf16.mxu0 0
  %1368 = vmatpush1.bf16.msra.mxu0 0
  %1369 = vmatprep.subr.bf16.mxu0 0
  %1370 = vmatpush1.bf16.msra.mxu0 0
  %1371 = vmatprep.subr.bf16.mxu0 %v474
  %1372 = vmatpush1.bf16.msra.mxu0 %v473
  %1373 = vmatprep.subr.bf16.mxu0 %v470
  %1374 = vmatpush1.bf16.msra.mxu0 %v469
  %1375 = vmatprep.subr.bf16.mxu0 %v466
  %1376 = vmatpush1.bf16.msra.mxu0 %v465
  %1377 = vmatprep.subr.bf16.mxu0 %v462
  %1378 = vmatpush1.bf16.msra.mxu0 %v461
  %1379 = vmatprep.subr.bf16.mxu0 %v458
  %1380 = vmatpush1.bf16.msra.mxu0 %v457
  %1381 = vmatprep.subr.bf16.mxu0 0
  %1382 = vmatpush2.bf16.msra.mxu0 0
  %1383 = vmatprep.subr.bf16.mxu0 0
  %1384 = vmatpush2.bf16.msra.mxu0 0
  %1385 = vmatprep.subr.bf16.mxu0 0
  %1386 = vmatpush2.bf16.msra.mxu0 0
  %1387 = vmatprep.subr.bf16.mxu0 0
  %1388 = vmatpush2.bf16.msra.mxu0 0
  %1389 = vmatprep.subr.bf16.mxu0 0
  %1390 = vmatpush2.bf16.msra.mxu0 0
  %1391 = vmatprep.subr.bf16.mxu0 0
  %1392 = vmatpush2.bf16.msra.mxu0 0
  %1393 = vmatprep.subr.bf16.mxu0 0
  %1394 = vmatpush2.bf16.msra.mxu0 0
  %1395 = vmatprep.subr.bf16.mxu0 0
  %1396 = vmatpush2.bf16.msra.mxu0 0
  %1397 = vmatprep.mubr.bf16.mxu0 0
  %1398 = vmatmul.mubr.bf16.gmra.mxu0 %v1201
  %v1399 = vpop.f32.mrf.mxu0
  %v1400 = vadd.f32 %v1347, %v1399
  %v1401 = vpop.f32.mrf.mxu0
  %v1402 = vadd.f32 %v1349, %v1401
  %v1403 = vpop.f32.mrf.mxu0
  %v1404 = vadd.f32 %v1351, %v1403
  %v1405 = vpop.f32.mrf.mxu0
  %v1406 = vadd.f32 %v1353, %v1405
  %1407 = vmatprep.mubr.bf16.mxu0 0
  %1408 = vmatmul.mubr.bf16.gmra.mxu0 %v1204
  %v1409 = vpop.f32.mrf.mxu0
  %v1410 = vadd.f32 %v1357, %v1409
  %v1411 = vpop.f32.mrf.mxu0
  %v1412 = vadd.f32 %v1359, %v1411
  %v1413 = vpop.f32.mrf.mxu0
  %v1414 = vadd.f32 %v1361, %v1413
  %v1415 = vpop.f32.mrf.mxu0
  %v1416 = vadd.f32 %v1363, %v1415
  %1417 = vdwg.mxu0
  %v1418 = vxor.u32 %v1294, 2147483648
  %v1419 = vxor.u32 %v1296, 2147483648
  %v1420 = vxor.u32 %v1400, 2147483648
  %v1421 = vxor.u32 %v1402, 2147483648
  %v1422 = vxor.u32 %v1298, 2147483648
  %v1423 = vxor.u32 %v1300, 2147483648
  %v1424 = vxor.u32 %v1404, 2147483648
  %v1425 = vxor.u32 %v1406, 2147483648
  %v1426 = vxor.u32 %v1304, 2147483648
  %v1427 = vxor.u32 %v1306, 2147483648
  %v1428 = vxor.u32 %v1410, 2147483648
  %v1429 = vxor.u32 %v1412, 2147483648
  %v1430 = vxor.u32 %v1308, 2147483648
  %v1431 = vxor.u32 %v1310, 2147483648
  %v1432 = vxor.u32 %v1414, 2147483648
  %v1433 = vxor.u32 %v1416, 2147483648
  %v1434 = vmul.f32 %v1418, 1.442695
  %v1435 = vpow.pop %v1434
  %v1436 = vmul.f32 %v1419, 1.442695
  %v1437 = vpow.pop %v1436
  %v1438 = vmul.f32 %v1420, 1.442695
  %v1439 = vpow.pop %v1438
  %v1440 = vmul.f32 %v1421, 1.442695
  %v1441 = vpow.pop %v1440
  %v1442 = vmul.f32 %v1422, 1.442695
  %v1443 = vpow.pop %v1442
  %v1444 = vmul.f32 %v1423, 1.442695
  %v1445 = vpow.pop %v1444
  %v1446 = vmul.f32 %v1424, 1.442695
  %v1447 = vpow.pop %v1446
  %v1448 = vmul.f32 %v1425, 1.442695
  %v1449 = vpow.pop %v1448
  %v1450 = vmul.f32 %v1426, 1.442695
  %v1451 = vpow.pop %v1450
  %v1452 = vmul.f32 %v1427, 1.442695
  %v1453 = vpow.pop %v1452
  %v1454 = vmul.f32 %v1428, 1.442695
  %v1455 = vpow.pop %v1454
  %v1456 = vmul.f32 %v1429, 1.442695
  %v1457 = vpow.pop %v1456
  %v1458 = vmul.f32 %v1430, 1.442695
  %v1459 = vpow.pop %v1458
  %v1460 = vmul.f32 %v1431, 1.442695
  %v1461 = vpow.pop %v1460
  %v1462 = vmul.f32 %v1432, 1.442695
  %v1463 = vpow.pop %v1462
  %v1464 = vmul.f32 %v1433, 1.442695
  %v1465 = vpow.pop %v1464
  %v1466 = vadd.f32 %v1435, 1.0
  %v1467 = vadd.f32 %v1437, 1.0
  %v1468 = vadd.f32 %v1439, 1.0
  %v1469 = vadd.f32 %v1441, 1.0
  %v1470 = vadd.f32 %v1443, 1.0
  %v1471 = vadd.f32 %v1445, 1.0
  %v1472 = vadd.f32 %v1447, 1.0
  %v1473 = vadd.f32 %v1449, 1.0
  %v1474 = vadd.f32 %v1451, 1.0
  %v1475 = vadd.f32 %v1453, 1.0
  %v1476 = vadd.f32 %v1455, 1.0
  %v1477 = vadd.f32 %v1457, 1.0
  %v1478 = vadd.f32 %v1459, 1.0
  %v1479 = vadd.f32 %v1461, 1.0
  %v1480 = vadd.f32 %v1463, 1.0
  %v1481 = vadd.f32 %v1465, 1.0
  %v1482 = vrcp.pop %v1466
  %v1483 = vmul.f32 1.0, %v1482
  %v1484 = vrcp.pop %v1467
  %v1485 = vmul.f32 1.0, %v1484
  %v1486 = vrcp.pop %v1468
  %v1487 = vmul.f32 1.0, %v1486
  %v1488 = vrcp.pop %v1469
  %v1489 = vmul.f32 1.0, %v1488
  %v1490 = vrcp.pop %v1470
  %v1491 = vmul.f32 1.0, %v1490
  %v1492 = vrcp.pop %v1471
  %v1493 = vmul.f32 1.0, %v1492
  %v1494 = vrcp.pop %v1472
  %v1495 = vmul.f32 1.0, %v1494
  %v1496 = vrcp.pop %v1473
  %v1497 = vmul.f32 1.0, %v1496
  %v1498 = vrcp.pop %v1474
  %v1499 = vmul.f32 1.0, %v1498
  %v1500 = vrcp.pop %v1475
  %v1501 = vmul.f32 1.0, %v1500
  %v1502 = vrcp.pop %v1476
  %v1503 = vmul.f32 1.0, %v1502
  %v1504 = vrcp.pop %v1477
  %v1505 = vmul.f32 1.0, %v1504
  %v1506 = vrcp.pop %v1478
  %v1507 = vmul.f32 1.0, %v1506
  %v1508 = vrcp.pop %v1479
  %v1509 = vmul.f32 1.0, %v1508
  %v1510 = vrcp.pop %v1480
  %v1511 = vmul.f32 1.0, %v1510
  %v1512 = vrcp.pop %v1481
  %v1513 = vmul.f32 1.0, %v1512
  %v1514 = vld [vmem:[%s1] sm:$0xff]
  %v1515 = vld [vmem:[%s1 + $0x8] sm:$0xff]
  %v1516 = vld [vmem:[%s1 + $0x10] sm:$0xff]
  %v1517 = vld [vmem:[%s1 + $0x18] sm:$0xff]
  %v1518 = vld [vmem:[%s1 + $0x20] sm:$0xff]
  %v1519 = vld [vmem:[%s1 + $0x28] sm:$0xff]
  %v1520 = vld [vmem:[%s1 + $0x30] sm:$0xff]
  %v1521 = vld [vmem:[%s1 + $0x38] sm:$0xff]
  %v1522 = vld [vmem:[%s1 + $0x40] sm:$0xff]
  %v1523 = vld [vmem:[%s1 + $0x48] sm:$0xff]
  %v1524 = vld [vmem:[%s1 + $0x50] sm:$0xff]
  %v1525 = vld [vmem:[%s1 + $0x58] sm:$0xff]
  %v1526 = vld [vmem:[%s1 + $0x60] sm:$0xff]
  %v1527 = vld [vmem:[%s1 + $0x68] sm:$0xff]
  %v1528 = vld [vmem:[%s1 + $0x70] sm:$0xff]
  %v1529 = vld [vmem:[%s1 + $0x78] sm:$0xff]
  %v1530 = vmul.f32 %v1483, %v1514
  %v1531 = vmul.f32 %v1485, %v1515
  %v1532 = vmul.f32 %v1487, %v1516
  %v1533 = vmul.f32 %v1489, %v1517
  %v1534 = vmul.f32 %v1491, %v1518
  %v1535 = vmul.f32 %v1493, %v1519
  %v1536 = vmul.f32 %v1495, %v1520
  %v1537 = vmul.f32 %v1497, %v1521
  %v1538 = vmul.f32 %v1499, %v1522
  %v1539 = vmul.f32 %v1501, %v1523
  %v1540 = vmul.f32 %v1503, %v1524
  %v1541 = vmul.f32 %v1505, %v1525
  %v1542 = vmul.f32 %v1507, %v1526
  %v1543 = vmul.f32 %v1509, %v1527
  %v1544 = vmul.f32 %v1511, %v1528
  %v1545 = vmul.f32 %v1513, %v1529
  %v1546 = vadd.f32 %v1530, %v1146
  %v1547 = vadd.f32 %v1531, %v1147
  %v1548 = vadd.f32 %v1532, %v1148
  %v1549 = vadd.f32 %v1533, %v1149
  %v1550 = vadd.f32 %v1534, %v1150
  %v1551 = vadd.f32 %v1535, %v1151
  %v1552 = vadd.f32 %v1536, %v1152
  %v1553 = vadd.f32 %v1537, %v1153
  %v1554 = vadd.f32 %v1538, %v1154
  %v1555 = vadd.f32 %v1539, %v1155
  %v1556 = vadd.f32 %v1540, %v1156
  %v1557 = vadd.f32 %v1541, %v1157
  %v1558 = vadd.f32 %v1542, %v1158
  %v1559 = vadd.f32 %v1543, %v1159
  %v1560 = vadd.f32 %v1544, %v1160
  %v1561 = vadd.f32 %v1545, %v1161
  %1562 = vst [vmem:[%s4] sm:$0xff] %v1546
  %1563 = vst [vmem:[%s4 + $0x8] sm:$0xff] %v1547
  %1564 = vst [vmem:[%s4 + $0x10] sm:$0xff] %v1548
  %1565 = vst [vmem:[%s4 + $0x18] sm:$0xff] %v1549
  %1566 = vst [vmem:[%s4 + $0x20] sm:$0xff] %v1550
  %1567 = vst [vmem:[%s4 + $0x28] sm:$0xff] %v1551
  %1568 = vst [vmem:[%s4 + $0x30] sm:$0xff] %v1552
  %1569 = vst [vmem:[%s4 + $0x38] sm:$0xff] %v1553
  %1570 = vst [vmem:[%s4 + $0x40] sm:$0xff] %v1554
  %1571 = vst [vmem:[%s4 + $0x48] sm:$0xff] %v1555
  %1572 = vst [vmem:[%s4 + $0x50] sm:$0xff] %v1556
  %1573 = vst [vmem:[%s4 + $0x58] sm:$0xff] %v1557
  %1574 = vst [vmem:[%s4 + $0x60] sm:$0xff] %v1558
  %1575 = vst [vmem:[%s4 + $0x68] sm:$0xff] %v1559
  %1576 = vst [vmem:[%s4 + $0x70] sm:$0xff] %v1560
  %1577 = vst [vmem:[%s4 + $0x78] sm:$0xff] %v1561
  %v1578 = vld [vmem:[%s2 + $0x60] sm:$0xff]
  %v1579 = vld [vmem:[%s2 + $0x68] sm:$0xf]
  %v1580 = vld [vmem:[%s2 + $0x6c] sm:$0xff]
  %v1581 = vld [vmem:[%s2 + $0x74] sm:$0xf]
  %v1582 = vld [vmem:[%s2 + $0x78] sm:$0xff]
  %v1583 = vld [vmem:[%s2 + $0x80] sm:$0xf]
  %v1584 = vld [vmem:[%s2 + $0x84] sm:$0xff]
  %v1585 = vld [vmem:[%s2 + $0x8c] sm:$0xf]
  %v1586 = vld [vmem:[%s0] sm:$0xff]
  %v1587 = vld [vmem:[%s0 + $0x8] sm:$0xff]
  %v1588 = vld [vmem:[%s0 + $0x10] sm:$0xff]
  %v1589 = vld [vmem:[%s0 + $0x18] sm:$0xff]
  %v1590 = vld [vmem:[%s0 + $0x20] sm:$0xff]
  %v1591 = vld [vmem:[%s0 + $0x28] sm:$0xff]
  %v1592 = vld [vmem:[%s0 + $0x30] sm:$0xff]
  %v1593 = vld [vmem:[%s0 + $0x38] sm:$0xff]
  %v1594 = vld [vmem:[%s0 + $0x40] sm:$0xff]
  %v1595 = vld [vmem:[%s0 + $0x48] sm:$0xff]
  %v1596 = vld [vmem:[%s0 + $0x50] sm:$0xff]
  %v1597 = vld [vmem:[%s0 + $0x58] sm:$0xff]
  %v1598 = vld [vmem:[%s0 + $0x60] sm:$0xff]
  %v1599 = vld [vmem:[%s0 + $0x68] sm:$0xff]
  %v1600 = vld [vmem:[%s0 + $0x70] sm:$0xff]
  %v1601 = vld [vmem:[%s0 + $0x78] sm:$0xff]
  %v1602 = vld [vmem:[%s0 + $0x80] sm:$0xff]
  %v1603 = vld [vmem:[%s0 + $0x88] sm:$0xff]
  %v1604 = vld [vmem:[%s0 + $0x90] sm:$0xff]
  %v1605 = vld [vmem:[%s0 + $0x98] sm:$0xff]
  %v1606 = vld [vmem:[%s0 + $0xa0] sm:$0xff]
  %v1607 = vld [vmem:[%s0 + $0xa8] sm:$0xff]
  %v1608 = vld [vmem:[%s0 + $0xb0] sm:$0xff]
  %v1609 = vld [vmem:[%s0 + $0xb8] sm:$0xff]
  %v1610 = vld [vmem:[%s0 + $0xc0] sm:$0xff]
  %v1611 = vld [vmem:[%s0 + $0xc8] sm:$0xff]
  %v1612 = vld [vmem:[%s0 + $0xd0] sm:$0xff]
  %v1613 = vld [vmem:[%s0 + $0xd8] sm:$0xff]
  %v1614 = vld [vmem:[%s0 + $0xe0] sm:$0xff]
  %v1615 = vld [vmem:[%s0 + $0xe8] sm:$0xff]
  %v1616 = vld [vmem:[%s0 + $0xf0] sm:$0xff]
  %v1617 = vld [vmem:[%s0 + $0xf8] sm:$0xff]
  %v1618 = vld [vmem:[%s0 + $0x100] sm:$0xff]
  %v1619 = vld [vmem:[%s0 + $0x108] sm:$0xff]
  %v1620 = vld [vmem:[%s0 + $0x110] sm:$0xff]
  %v1621 = vld [vmem:[%s0 + $0x118] sm:$0xff]
  %v1622 = vld [vmem:[%s0 + $0x120] sm:$0xff]
  %v1623 = vld [vmem:[%s0 + $0x128] sm:$0xff]
  %v1624 = vld [vmem:[%s0 + $0x130] sm:$0xff]
  %v1625 = vld [vmem:[%s0 + $0x138] sm:$0xff]
  %v1626 = vld [vmem:[%s0 + $0x140] sm:$0xff]
  %v1627 = vld [vmem:[%s0 + $0x148] sm:$0xff]
  %v1628 = vld [vmem:[%s0 + $0x150] sm:$0xff]
  %v1629 = vld [vmem:[%s0 + $0x158] sm:$0xff]
  %v1630 = vld [vmem:[%s0 + $0x160] sm:$0xff]
  %v1631 = vld [vmem:[%s0 + $0x168] sm:$0xff]
  %v1632 = vld [vmem:[%s0 + $0x170] sm:$0xff]
  %v1633 = vld [vmem:[%s0 + $0x178] sm:$0xff]
  %v1634 = vld [vmem:[%s0 + $0x180] sm:$0xff]
  %v1635 = vld [vmem:[%s0 + $0x188] sm:$0xff]
  %v1636 = vld [vmem:[%s0 + $0x190] sm:$0xff]
  %v1637 = vld [vmem:[%s0 + $0x198] sm:$0xff]
  %v1638 = vld [vmem:[%s0 + $0x1a0] sm:$0xff]
  %v1639 = vld [vmem:[%s0 + $0x1a8] sm:$0xff]
  %v1640 = vld [vmem:[%s0 + $0x1b0] sm:$0xff]
  %v1641 = vld [vmem:[%s0 + $0x1b8] sm:$0xff]
  %v1642 = vld [vmem:[%s0 + $0x1c0] sm:$0xff]
  %v1643 = vld [vmem:[%s0 + $0x1c8] sm:$0xff]
  %v1644 = vld [vmem:[%s0 + $0x1d0] sm:$0xff]
  %v1645 = vld [vmem:[%s0 + $0x1d8] sm:$0xff]
  %v1646 = vld [vmem:[%s0 + $0x1e0] sm:$0xff]
  %v1647 = vld [vmem:[%s0 + $0x1e8] sm:$0xff]
  %v1648 = vld [vmem:[%s0 + $0x1f0] sm:$0xff]
  %v1649 = vld [vmem:[%s0 + $0x1f8] sm:$0xff]
  %v1650 = vld [vmem:[%s0 + $0x200] sm:$0xff]
  %v1651 = vld [vmem:[%s0 + $0x208] sm:$0xff]
  %v1652 = vld [vmem:[%s0 + $0x210] sm:$0xff]
  %v1653 = vld [vmem:[%s0 + $0x218] sm:$0xff]
  %v1654 = vld [vmem:[%s0 + $0x220] sm:$0xff]
  %v1655 = vld [vmem:[%s0 + $0x228] sm:$0xff]
  %v1656 = vld [vmem:[%s0 + $0x230] sm:$0xff]
  %v1657 = vld [vmem:[%s0 + $0x238] sm:$0xff]
  %v1658 = vld [vmem:[%s0 + $0x240] sm:$0xff]
  %v1659 = vld [vmem:[%s0 + $0x248] sm:$0xff]
  %v1660 = vld [vmem:[%s0 + $0x250] sm:$0xff]
  %v1661 = vld [vmem:[%s0 + $0x258] sm:$0xff]
  %v1662 = vld [vmem:[%s0 + $0x260] sm:$0xff]
  %v1663 = vld [vmem:[%s0 + $0x268] sm:$0xff]
  %v1664 = vld [vmem:[%s0 + $0x270] sm:$0xff]
  %v1665 = vld [vmem:[%s0 + $0x278] sm:$0xff]
  %v1666 = vld [vmem:[%s0 + $0x280] sm:$0xff]
  %v1667 = vld [vmem:[%s0 + $0x288] sm:$0xff]
  %v1668 = vld [vmem:[%s0 + $0x290] sm:$0xff]
  %v1669 = vld [vmem:[%s0 + $0x298] sm:$0xff]
  %v1678 = vunpack.c.l.b16 %v1578
  %v1679 = vunpack.c.h.b16 %v1578
  %v1680 = vunpack.c.l.b16 %v1579
  %v1681 = vunpack.c.l.b16 %v1580
  %v1682 = vunpack.c.h.b16 %v1580
  %v1683 = vunpack.c.l.b16 %v1581
  %v1684 = vunpack.c.l.b16 %v1582
  %v1685 = vunpack.c.h.b16 %v1582
  %v1686 = vunpack.c.l.b16 %v1583
  %v1687 = vunpack.c.l.b16 %v1584
  %v1688 = vunpack.c.h.b16 %v1584
  %v1689 = vunpack.c.l.b16 %v1585
  %v1690 = vpack.c.b16 %v1681, %v1678
  %v1691 = vpack.c.b16 %v1682, %v1679
  %v1692 = vpack.c.b16 %v1683, %v1680
  %v1693 = vpack.c.b16 %v1687, %v1684
  %v1694 = vpack.c.b16 %v1688, %v1685
  %v1695 = vpack.c.b16 %v1689, %v1686
  %v1784 = vunpack.c.l.b16 %v1586
  %v1785 = vunpack.c.h.b16 %v1586
  %v1786 = vunpack.c.l.b16 %v1587
  %v1787 = vunpack.c.h.b16 %v1587
  %v1788 = vunpack.c.l.b16 %v1588
  %v1789 = vunpack.c.h.b16 %v1588
  %v1790 = vunpack.c.l.b16 %v1589
  %v1791 = vunpack.c.h.b16 %v1589
  %v1792 = vunpack.c.l.b16 %v1590
  %v1793 = vunpack.c.h.b16 %v1590
  %v1794 = vunpack.c.l.b16 %v1591
  %v1795 = vunpack.c.h.b16 %v1591
  %v1796 = vunpack.c.l.b16 %v1592
  %v1797 = vunpack.c.h.b16 %v1592
  %v1798 = vunpack.c.l.b16 %v1593
  %v1799 = vunpack.c.h.b16 %v1593
  %v1800 = vunpack.c.l.b16 %v1594
  %v1801 = vunpack.c.h.b16 %v1594
  %v1802 = vunpack.c.l.b16 %v1595
  %v1803 = vunpack.c.h.b16 %v1595
  %v1804 = vunpack.c.l.b16 %v1596
  %v1805 = vunpack.c.h.b16 %v1596
  %v1806 = vunpack.c.l.b16 %v1597
  %v1807 = vunpack.c.h.b16 %v1597
  %v1808 = vunpack.c.l.b16 %v1598
  %v1809 = vunpack.c.h.b16 %v1598
  %v1810 = vunpack.c.l.b16 %v1599
  %v1811 = vunpack.c.h.b16 %v1599
  %v1812 = vunpack.c.l.b16 %v1600
  %v1813 = vunpack.c.h.b16 %v1600
  %v1814 = vunpack.c.l.b16 %v1601
  %v1815 = vunpack.c.h.b16 %v1601
  %v1816 = vunpack.c.l.b16 %v1602
  %v1817 = vunpack.c.h.b16 %v1602
  %v1818 = vunpack.c.l.b16 %v1603
  %v1819 = vunpack.c.h.b16 %v1603
  %v1820 = vunpack.c.l.b16 %v1604
  %v1821 = vunpack.c.h.b16 %v1604
  %v1822 = vunpack.c.l.b16 %v1605
  %v1823 = vunpack.c.h.b16 %v1605
  %v1824 = vunpack.c.l.b16 %v1606
  %v1825 = vunpack.c.h.b16 %v1606
  %v1826 = vunpack.c.l.b16 %v1607
  %v1827 = vunpack.c.h.b16 %v1607
  %v1828 = vunpack.c.l.b16 %v1608
  %v1829 = vunpack.c.h.b16 %v1608
  %v1830 = vunpack.c.l.b16 %v1609
  %v1831 = vunpack.c.h.b16 %v1609
  %v1832 = vunpack.c.l.b16 %v1610
  %v1833 = vunpack.c.h.b16 %v1610
  %v1834 = vunpack.c.l.b16 %v1611
  %v1835 = vunpack.c.h.b16 %v1611
  %v1836 = vunpack.c.l.b16 %v1612
  %v1837 = vunpack.c.h.b16 %v1612
  %v1838 = vunpack.c.l.b16 %v1613
  %v1839 = vunpack.c.h.b16 %v1613
  %v1840 = vunpack.c.l.b16 %v1614
  %v1841 = vunpack.c.h.b16 %v1614
  %v1842 = vunpack.c.l.b16 %v1615
  %v1843 = vunpack.c.h.b16 %v1615
  %v1844 = vunpack.c.l.b16 %v1616
  %v1845 = vunpack.c.h.b16 %v1616
  %v1846 = vunpack.c.l.b16 %v1617
  %v1847 = vunpack.c.h.b16 %v1617
  %v1848 = vunpack.c.l.b16 %v1618
  %v1849 = vunpack.c.h.b16 %v1618
  %v1850 = vunpack.c.l.b16 %v1619
  %v1851 = vunpack.c.h.b16 %v1619
  %v1852 = vunpack.c.l.b16 %v1620
  %v1853 = vunpack.c.h.b16 %v1620
  %v1854 = vunpack.c.l.b16 %v1621
  %v1855 = vunpack.c.h.b16 %v1621
  %v1856 = vunpack.c.l.b16 %v1622
  %v1857 = vunpack.c.h.b16 %v1622
  %v1858 = vunpack.c.l.b16 %v1623
  %v1859 = vunpack.c.h.b16 %v1623
  %v1860 = vunpack.c.l.b16 %v1624
  %v1861 = vunpack.c.h.b16 %v1624
  %v1862 = vunpack.c.l.b16 %v1625
  %v1863 = vunpack.c.h.b16 %v1625
  %v1864 = vunpack.c.l.b16 %v1626
  %v1865 = vunpack.c.h.b16 %v1626
  %v1866 = vunpack.c.l.b16 %v1627
  %v1867 = vunpack.c.h.b16 %v1627
  %v1868 = vunpack.c.l.b16 %v1628
  %v1869 = vunpack.c.h.b16 %v1628
  %v1870 = vunpack.c.l.b16 %v1629
  %v1871 = vunpack.c.h.b16 %v1629
  %v1872 = vunpack.c.l.b16 %v1630
  %v1873 = vunpack.c.h.b16 %v1630
  %v1874 = vunpack.c.l.b16 %v1631
  %v1875 = vunpack.c.h.b16 %v1631
  %v1876 = vunpack.c.l.b16 %v1632
  %v1877 = vunpack.c.h.b16 %v1632
  %v1878 = vunpack.c.l.b16 %v1633
  %v1879 = vunpack.c.h.b16 %v1633
  %v1880 = vunpack.c.l.b16 %v1634
  %v1881 = vunpack.c.h.b16 %v1634
  %v1882 = vunpack.c.l.b16 %v1635
  %v1883 = vunpack.c.h.b16 %v1635
  %v1884 = vunpack.c.l.b16 %v1636
  %v1885 = vunpack.c.h.b16 %v1636
  %v1886 = vunpack.c.l.b16 %v1637
  %v1887 = vunpack.c.h.b16 %v1637
  %v1888 = vunpack.c.l.b16 %v1638
  %v1889 = vunpack.c.h.b16 %v1638
  %v1890 = vunpack.c.l.b16 %v1639
  %v1891 = vunpack.c.h.b16 %v1639
  %v1892 = vunpack.c.l.b16 %v1640
  %v1893 = vunpack.c.h.b16 %v1640
  %v1894 = vunpack.c.l.b16 %v1641
  %v1895 = vunpack.c.h.b16 %v1641
  %v1896 = vunpack.c.l.b16 %v1642
  %v1897 = vunpack.c.h.b16 %v1642
  %v1898 = vunpack.c.l.b16 %v1643
  %v1899 = vunpack.c.h.b16 %v1643
  %v1900 = vunpack.c.l.b16 %v1644
  %v1901 = vunpack.c.h.b16 %v1644
  %v1902 = vunpack.c.l.b16 %v1645
  %v1903 = vunpack.c.h.b16 %v1645
  %v1904 = vunpack.c.l.b16 %v1646
  %v1905 = vunpack.c.h.b16 %v1646
  %v1906 = vunpack.c.l.b16 %v1647
  %v1907 = vunpack.c.h.b16 %v1647
  %v1908 = vunpack.c.l.b16 %v1648
  %v1909 = vunpack.c.h.b16 %v1648
  %v1910 = vunpack.c.l.b16 %v1649
  %v1911 = vunpack.c.h.b16 %v1649
  %v1912 = vunpack.c.l.b16 %v1650
  %v1913 = vunpack.c.h.b16 %v1650
  %v1914 = vunpack.c.l.b16 %v1651
  %v1915 = vunpack.c.h.b16 %v1651
  %v1916 = vunpack.c.l.b16 %v1652
  %v1917 = vunpack.c.h.b16 %v1652
  %v1918 = vunpack.c.l.b16 %v1653
  %v1919 = vunpack.c.h.b16 %v1653
  %v1920 = vunpack.c.l.b16 %v1654
  %v1921 = vunpack.c.h.b16 %v1654
  %v1922 = vunpack.c.l.b16 %v1655
  %v1923 = vunpack.c.h.b16 %v1655
  %v1924 = vunpack.c.l.b16 %v1656
  %v1925 = vunpack.c.h.b16 %v1656
  %v1926 = vunpack.c.l.b16 %v1657
  %v1927 = vunpack.c.h.b16 %v1657
  %v1928 = vunpack.c.l.b16 %v1658
  %v1929 = vunpack.c.h.b16 %v1658
  %v1930 = vunpack.c.l.b16 %v1659
  %v1931 = vunpack.c.h.b16 %v1659
  %v1932 = vunpack.c.l.b16 %v1660
  %v1933 = vunpack.c.h.b16 %v1660
  %v1934 = vunpack.c.l.b16 %v1661
  %v1935 = vunpack.c.h.b16 %v1661
  %v1936 = vunpack.c.l.b16 %v1662
  %v1937 = vunpack.c.h.b16 %v1662
  %v1938 = vunpack.c.l.b16 %v1663
  %v1939 = vunpack.c.h.b16 %v1663
  %v1940 = vunpack.c.l.b16 %v1664
  %v1941 = vunpack.c.h.b16 %v1664
  %v1942 = vunpack.c.l.b16 %v1665
  %v1943 = vunpack.c.h.b16 %v1665
  %v1944 = vunpack.c.l.b16 %v1666
  %v1945 = vunpack.c.h.b16 %v1666
  %v1946 = vunpack.c.l.b16 %v1667
  %v1947 = vunpack.c.h.b16 %v1667
  %v1948 = vunpack.c.l.b16 %v1668
  %v1949 = vunpack.c.h.b16 %v1668
  %v1950 = vunpack.c.l.b16 %v1669
  %v1951 = vunpack.c.h.b16 %v1669
  %v1952 = vpack.c.b16 %v1788, %v1784
  %v1953 = vpack.c.b16 %v1789, %v1785
  %v1954 = vpack.c.b16 %v1790, %v1786
  %v1955 = vpack.c.b16 %v1791, %v1787
  %v1956 = vpack.c.b16 %v1796, %v1792
  %v1957 = vpack.c.b16 %v1797, %v1793
  %v1958 = vpack.c.b16 %v1798, %v1794
  %v1959 = vpack.c.b16 %v1799, %v1795
  %v1960 = vpack.c.b16 %v1804, %v1800
  %v1961 = vpack.c.b16 %v1805, %v1801
  %v1962 = vpack.c.b16 %v1806, %v1802
  %v1963 = vpack.c.b16 %v1807, %v1803
  %v1964 = vpack.c.b16 %v1812, %v1808
  %v1965 = vpack.c.b16 %v1813, %v1809
  %v1966 = vpack.c.b16 %v1814, %v1810
  %v1967 = vpack.c.b16 %v1815, %v1811
  %v1968 = vpack.c.b16 %v1820, %v1816
  %v1969 = vpack.c.b16 %v1821, %v1817
  %v1970 = vpack.c.b16 %v1822, %v1818
  %v1971 = vpack.c.b16 %v1823, %v1819
  %v1972 = vpack.c.b16 %v1828, %v1824
  %v1973 = vpack.c.b16 %v1829, %v1825
  %v1974 = vpack.c.b16 %v1830, %v1826
  %v1975 = vpack.c.b16 %v1831, %v1827
  %v1976 = vpack.c.b16 %v1836, %v1832
  %v1977 = vpack.c.b16 %v1837, %v1833
  %v1978 = vpack.c.b16 %v1838, %v1834
  %v1979 = vpack.c.b16 %v1839, %v1835
  %v1980 = vpack.c.b16 %v1844, %v1840
  %v1981 = vpack.c.b16 %v1845, %v1841
  %v1982 = vpack.c.b16 %v1846, %v1842
  %v1983 = vpack.c.b16 %v1847, %v1843
  %v1984 = vpack.c.b16 %v1852, %v1848
  %v1985 = vpack.c.b16 %v1853, %v1849
  %v1986 = vpack.c.b16 %v1854, %v1850
  %v1987 = vpack.c.b16 %v1855, %v1851
  %v1988 = vpack.c.b16 %v1860, %v1856
  %v1989 = vpack.c.b16 %v1861, %v1857
  %v1990 = vpack.c.b16 %v1862, %v1858
  %v1991 = vpack.c.b16 %v1863, %v1859
  %v1992 = vpack.c.b16 %v1868, %v1864
  %v1993 = vpack.c.b16 %v1869, %v1865
  %v1994 = vpack.c.b16 %v1870, %v1866
  %v1995 = vpack.c.b16 %v1871, %v1867
  %v1996 = vpack.c.b16 %v1876, %v1872
  %v1997 = vpack.c.b16 %v1877, %v1873
  %v1998 = vpack.c.b16 %v1878, %v1874
  %v1999 = vpack.c.b16 %v1879, %v1875
  %v2000 = vpack.c.b16 %v1884, %v1880
  %v2001 = vpack.c.b16 %v1885, %v1881
  %v2002 = vpack.c.b16 %v1886, %v1882
  %v2003 = vpack.c.b16 %v1887, %v1883
  %v2004 = vpack.c.b16 %v1892, %v1888
  %v2005 = vpack.c.b16 %v1893, %v1889
  %v2006 = vpack.c.b16 %v1894, %v1890
  %v2007 = vpack.c.b16 %v1895, %v1891
  %v2008 = vpack.c.b16 %v1900, %v1896
  %v2009 = vpack.c.b16 %v1901, %v1897
  %v2010 = vpack.c.b16 %v1902, %v1898
  %v2011 = vpack.c.b16 %v1903, %v1899
  %v2012 = vpack.c.b16 %v1908, %v1904
  %v2013 = vpack.c.b16 %v1909, %v1905
  %v2014 = vpack.c.b16 %v1910, %v1906
  %v2015 = vpack.c.b16 %v1911, %v1907
  %v2016 = vpack.c.b16 %v1916, %v1912
  %v2017 = vpack.c.b16 %v1917, %v1913
  %v2018 = vpack.c.b16 %v1918, %v1914
  %v2019 = vpack.c.b16 %v1919, %v1915
  %v2020 = vpack.c.b16 %v1924, %v1920
  %v2021 = vpack.c.b16 %v1925, %v1921
  %v2022 = vpack.c.b16 %v1926, %v1922
  %v2023 = vpack.c.b16 %v1927, %v1923
  %v2024 = vpack.c.b16 %v1932, %v1928
  %v2025 = vpack.c.b16 %v1933, %v1929
  %v2026 = vpack.c.b16 %v1934, %v1930
  %v2027 = vpack.c.b16 %v1935, %v1931
  %v2028 = vpack.c.b16 %v1940, %v1936
  %v2029 = vpack.c.b16 %v1941, %v1937
  %v2030 = vpack.c.b16 %v1942, %v1938
  %v2031 = vpack.c.b16 %v1943, %v1939
  %v2032 = vpack.c.b16 %v1948, %v1944
  %v2033 = vpack.c.b16 %v1949, %v1945
  %v2034 = vpack.c.b16 %v1950, %v1946
  %v2035 = vpack.c.b16 %v1951, %v1947
  %v2121 = vsel %vm559, %v1692, 0
  %v2124 = vsel %vm559, %v1695, 0
  %2126 = vmatprep.subr.bf16.mxu0 %v1981
  %2127 = vmatpush1.bf16.msra.mxu0 %v1980
  %2128 = vmatprep.subr.bf16.mxu0 %v1977
  %2129 = vmatpush1.bf16.msra.mxu0 %v1976
  %2130 = vmatprep.subr.bf16.mxu0 %v1973
  %2131 = vmatpush1.bf16.msra.mxu0 %v1972
  %2132 = vmatprep.subr.bf16.mxu0 %v1969
  %2133 = vmatpush1.bf16.msra.mxu0 %v1968
  %2134 = vmatprep.subr.bf16.mxu0 %v1965
  %2135 = vmatpush1.bf16.msra.mxu0 %v1964
  %2136 = vmatprep.subr.bf16.mxu0 %v1961
  %2137 = vmatpush1.bf16.msra.mxu0 %v1960
  %2138 = vmatprep.subr.bf16.mxu0 %v1957
  %2139 = vmatpush1.bf16.msra.mxu0 %v1956
  %2140 = vmatprep.subr.bf16.mxu0 %v1953
  %2141 = vmatpush1.bf16.msra.mxu0 %v1952
  %2142 = vmatprep.subr.bf16.mxu0 %v2013
  %2143 = vmatpush2.bf16.msra.mxu0 %v2012
  %2144 = vmatprep.subr.bf16.mxu0 %v2009
  %2145 = vmatpush2.bf16.msra.mxu0 %v2008
  %2146 = vmatprep.subr.bf16.mxu0 %v2005
  %2147 = vmatpush2.bf16.msra.mxu0 %v2004
  %2148 = vmatprep.subr.bf16.mxu0 %v2001
  %2149 = vmatpush2.bf16.msra.mxu0 %v2000
  %2150 = vmatprep.subr.bf16.mxu0 %v1997
  %2151 = vmatpush2.bf16.msra.mxu0 %v1996
  %2152 = vmatprep.subr.bf16.mxu0 %v1993
  %2153 = vmatpush2.bf16.msra.mxu0 %v1992
  %2154 = vmatprep.subr.bf16.mxu0 %v1989
  %2155 = vmatpush2.bf16.msra.mxu0 %v1988
  %2156 = vmatprep.subr.bf16.mxu0 %v1985
  %2157 = vmatpush2.bf16.msra.mxu0 %v1984
  %2158 = vmatprep.mubr.bf16.mxu0 %v1691
  %2159 = vmatmul.mubr.bf16.gmra.mxu0 %v1690
  %v2160 = vpop.f32.mrf.mxu0
  %v2161 = vadd.f32 0.0, %v2160
  %v2162 = vpop.f32.mrf.mxu0
  %v2163 = vadd.f32 0.0, %v2162
  %v2164 = vpop.f32.mrf.mxu0
  %v2165 = vadd.f32 0.0, %v2164
  %v2166 = vpop.f32.mrf.mxu0
  %v2167 = vadd.f32 0.0, %v2166
  %2168 = vmatprep.mubr.bf16.mxu0 %v1694
  %2169 = vmatmul.mubr.bf16.gmra.mxu0 %v1693
  %v2170 = vpop.f32.mrf.mxu0
  %v2171 = vadd.f32 0.0, %v2170
  %v2172 = vpop.f32.mrf.mxu0
  %v2173 = vadd.f32 0.0, %v2172
  %v2174 = vpop.f32.mrf.mxu0
  %v2175 = vadd.f32 0.0, %v2174
  %v2176 = vpop.f32.mrf.mxu0
  %v2177 = vadd.f32 0.0, %v2176
  %2178 = vdwg.mxu0
  %2179 = vmatprep.subr.bf16.mxu0 0
  %2180 = vmatpush1.bf16.msra.mxu0 0
  %2181 = vmatprep.subr.bf16.mxu0 0
  %2182 = vmatpush1.bf16.msra.mxu0 0
  %2183 = vmatprep.subr.bf16.mxu0 0
  %2184 = vmatpush1.bf16.msra.mxu0 0
  %2185 = vmatprep.subr.bf16.mxu0 %v2033
  %2186 = vmatpush1.bf16.msra.mxu0 %v2032
  %2187 = vmatprep.subr.bf16.mxu0 %v2029
  %2188 = vmatpush1.bf16.msra.mxu0 %v2028
  %2189 = vmatprep.subr.bf16.mxu0 %v2025
  %2190 = vmatpush1.bf16.msra.mxu0 %v2024
  %2191 = vmatprep.subr.bf16.mxu0 %v2021
  %2192 = vmatpush1.bf16.msra.mxu0 %v2020
  %2193 = vmatprep.subr.bf16.mxu0 %v2017
  %2194 = vmatpush1.bf16.msra.mxu0 %v2016
  %2195 = vmatprep.subr.bf16.mxu0 0
  %2196 = vmatpush2.bf16.msra.mxu0 0
  %2197 = vmatprep.subr.bf16.mxu0 0
  %2198 = vmatpush2.bf16.msra.mxu0 0
  %2199 = vmatprep.subr.bf16.mxu0 0
  %2200 = vmatpush2.bf16.msra.mxu0 0
  %2201 = vmatprep.subr.bf16.mxu0 0
  %2202 = vmatpush2.bf16.msra.mxu0 0
  %2203 = vmatprep.subr.bf16.mxu0 0
  %2204 = vmatpush2.bf16.msra.mxu0 0
  %2205 = vmatprep.subr.bf16.mxu0 0
  %2206 = vmatpush2.bf16.msra.mxu0 0
  %2207 = vmatprep.subr.bf16.mxu0 0
  %2208 = vmatpush2.bf16.msra.mxu0 0
  %2209 = vmatprep.subr.bf16.mxu0 0
  %2210 = vmatpush2.bf16.msra.mxu0 0
  %2211 = vmatprep.mubr.bf16.mxu0 0
  %2212 = vmatmul.mubr.bf16.gmra.mxu0 %v2121
  %v2213 = vpop.f32.mrf.mxu0
  %v2214 = vadd.f32 %v2161, %v2213
  %v2215 = vpop.f32.mrf.mxu0
  %v2216 = vadd.f32 %v2163, %v2215
  %v2217 = vpop.f32.mrf.mxu0
  %v2218 = vadd.f32 %v2165, %v2217
  %v2219 = vpop.f32.mrf.mxu0
  %v2220 = vadd.f32 %v2167, %v2219
  %2221 = vmatprep.mubr.bf16.mxu0 0
  %2222 = vmatmul.mubr.bf16.gmra.mxu0 %v2124
  %v2223 = vpop.f32.mrf.mxu0
  %v2224 = vadd.f32 %v2171, %v2223
  %v2225 = vpop.f32.mrf.mxu0
  %v2226 = vadd.f32 %v2173, %v2225
  %v2227 = vpop.f32.mrf.mxu0
  %v2228 = vadd.f32 %v2175, %v2227
  %v2229 = vpop.f32.mrf.mxu0
  %v2230 = vadd.f32 %v2177, %v2229
  %2231 = vdwg.mxu0
  %2232 = vmatprep.subr.bf16.mxu0 %v1983
  %2233 = vmatpush1.bf16.msra.mxu0 %v1982
  %2234 = vmatprep.subr.bf16.mxu0 %v1979
  %2235 = vmatpush1.bf16.msra.mxu0 %v1978
  %2236 = vmatprep.subr.bf16.mxu0 %v1975
  %2237 = vmatpush1.bf16.msra.mxu0 %v1974
  %2238 = vmatprep.subr.bf16.mxu0 %v1971
  %2239 = vmatpush1.bf16.msra.mxu0 %v1970
  %2240 = vmatprep.subr.bf16.mxu0 %v1967
  %2241 = vmatpush1.bf16.msra.mxu0 %v1966
  %2242 = vmatprep.subr.bf16.mxu0 %v1963
  %2243 = vmatpush1.bf16.msra.mxu0 %v1962
  %2244 = vmatprep.subr.bf16.mxu0 %v1959
  %2245 = vmatpush1.bf16.msra.mxu0 %v1958
  %2246 = vmatprep.subr.bf16.mxu0 %v1955
  %2247 = vmatpush1.bf16.msra.mxu0 %v1954
  %2248 = vmatprep.subr.bf16.mxu0 %v2015
  %2249 = vmatpush2.bf16.msra.mxu0 %v2014
  %2250 = vmatprep.subr.bf16.mxu0 %v2011
  %2251 = vmatpush2.bf16.msra.mxu0 %v2010
  %2252 = vmatprep.subr.bf16.mxu0 %v2007
  %2253 = vmatpush2.bf16.msra.mxu0 %v2006
  %2254 = vmatprep.subr.bf16.mxu0 %v2003
  %2255 = vmatpush2.bf16.msra.mxu0 %v2002
  %2256 = vmatprep.subr.bf16.mxu0 %v1999
  %2257 = vmatpush2.bf16.msra.mxu0 %v1998
  %2258 = vmatprep.subr.bf16.mxu0 %v1995
  %2259 = vmatpush2.bf16.msra.mxu0 %v1994
  %2260 = vmatprep.subr.bf16.mxu0 %v1991
  %2261 = vmatpush2.bf16.msra.mxu0 %v1990
  %2262 = vmatprep.subr.bf16.mxu0 %v1987
  %2263 = vmatpush2.bf16.msra.mxu0 %v1986
  %2264 = vmatprep.mubr.bf16.mxu0 %v1691
  %2265 = vmatmul.mubr.bf16.gmra.mxu0 %v1690
  %v2266 = vpop.f32.mrf.mxu0
  %v2267 = vadd.f32 0.0, %v2266
  %v2268 = vpop.f32.mrf.mxu0
  %v2269 = vadd.f32 0.0, %v2268
  %v2270 = vpop.f32.mrf.mxu0
  %v2271 = vadd.f32 0.0, %v2270
  %v2272 = vpop.f32.mrf.mxu0
  %v2273 = vadd.f32 0.0, %v2272
  %2274 = vmatprep.mubr.bf16.mxu0 %v1694
  %2275 = vmatmul.mubr.bf16.gmra.mxu0 %v1693
  %v2276 = vpop.f32.mrf.mxu0
  %v2277 = vadd.f32 0.0, %v2276
  %v2278 = vpop.f32.mrf.mxu0
  %v2279 = vadd.f32 0.0, %v2278
  %v2280 = vpop.f32.mrf.mxu0
  %v2281 = vadd.f32 0.0, %v2280
  %v2282 = vpop.f32.mrf.mxu0
  %v2283 = vadd.f32 0.0, %v2282
  %2284 = vdwg.mxu0
  %2285 = vmatprep.subr.bf16.mxu0 0
  %2286 = vmatpush1.bf16.msra.mxu0 0
  %2287 = vmatprep.subr.bf16.mxu0 0
  %2288 = vmatpush1.bf16.msra.mxu0 0
  %2289 = vmatprep.subr.bf16.mxu0 0
  %2290 = vmatpush1.bf16.msra.mxu0 0
  %2291 = vmatprep.subr.bf16.mxu0 %v2035
  %2292 = vmatpush1.bf16.msra.mxu0 %v2034
  %2293 = vmatprep.subr.bf16.mxu0 %v2031
  %2294 = vmatpush1.bf16.msra.mxu0 %v2030
  %2295 = vmatprep.subr.bf16.mxu0 %v2027
  %2296 = vmatpush1.bf16.msra.mxu0 %v2026
  %2297 = vmatprep.subr.bf16.mxu0 %v2023
  %2298 = vmatpush1.bf16.msra.mxu0 %v2022
  %2299 = vmatprep.subr.bf16.mxu0 %v2019
  %2300 = vmatpush1.bf16.msra.mxu0 %v2018
  %2301 = vmatprep.subr.bf16.mxu0 0
  %2302 = vmatpush2.bf16.msra.mxu0 0
  %2303 = vmatprep.subr.bf16.mxu0 0
  %2304 = vmatpush2.bf16.msra.mxu0 0
  %2305 = vmatprep.subr.bf16.mxu0 0
  %2306 = vmatpush2.bf16.msra.mxu0 0
  %2307 = vmatprep.subr.bf16.mxu0 0
  %2308 = vmatpush2.bf16.msra.mxu0 0
  %2309 = vmatprep.subr.bf16.mxu0 0
  %2310 = vmatpush2.bf16.msra.mxu0 0
  %2311 = vmatprep.subr.bf16.mxu0 0
  %2312 = vmatpush2.bf16.msra.mxu0 0
  %2313 = vmatprep.subr.bf16.mxu0 0
  %2314 = vmatpush2.bf16.msra.mxu0 0
  %2315 = vmatprep.subr.bf16.mxu0 0
  %2316 = vmatpush2.bf16.msra.mxu0 0
  %2317 = vmatprep.mubr.bf16.mxu0 0
  %2318 = vmatmul.mubr.bf16.gmra.mxu0 %v2121
  %v2319 = vpop.f32.mrf.mxu0
  %v2320 = vadd.f32 %v2267, %v2319
  %v2321 = vpop.f32.mrf.mxu0
  %v2322 = vadd.f32 %v2269, %v2321
  %v2323 = vpop.f32.mrf.mxu0
  %v2324 = vadd.f32 %v2271, %v2323
  %v2325 = vpop.f32.mrf.mxu0
  %v2326 = vadd.f32 %v2273, %v2325
  %2327 = vmatprep.mubr.bf16.mxu0 0
  %2328 = vmatmul.mubr.bf16.gmra.mxu0 %v2124
  %v2329 = vpop.f32.mrf.mxu0
  %v2330 = vadd.f32 %v2277, %v2329
  %v2331 = vpop.f32.mrf.mxu0
  %v2332 = vadd.f32 %v2279, %v2331
  %v2333 = vpop.f32.mrf.mxu0
  %v2334 = vadd.f32 %v2281, %v2333
  %v2335 = vpop.f32.mrf.mxu0
  %v2336 = vadd.f32 %v2283, %v2335
  %2337 = vdwg.mxu0
  %v2338 = vxor.u32 %v2214, 2147483648
  %v2339 = vxor.u32 %v2216, 2147483648
  %v2340 = vxor.u32 %v2320, 2147483648
  %v2341 = vxor.u32 %v2322, 2147483648
  %v2342 = vxor.u32 %v2218, 2147483648
  %v2343 = vxor.u32 %v2220, 2147483648
  %v2344 = vxor.u32 %v2324, 2147483648
  %v2345 = vxor.u32 %v2326, 2147483648
  %v2346 = vxor.u32 %v2224, 2147483648
  %v2347 = vxor.u32 %v2226, 2147483648
  %v2348 = vxor.u32 %v2330, 2147483648
  %v2349 = vxor.u32 %v2332, 2147483648
  %v2350 = vxor.u32 %v2228, 2147483648
  %v2351 = vxor.u32 %v2230, 2147483648
  %v2352 = vxor.u32 %v2334, 2147483648
  %v2353 = vxor.u32 %v2336, 2147483648
  %v2354 = vmul.f32 %v2338, 1.442695
  %v2355 = vpow.pop %v2354
  %v2356 = vmul.f32 %v2339, 1.442695
  %v2357 = vpow.pop %v2356
  %v2358 = vmul.f32 %v2340, 1.442695
  %v2359 = vpow.pop %v2358
  %v2360 = vmul.f32 %v2341, 1.442695
  %v2361 = vpow.pop %v2360
  %v2362 = vmul.f32 %v2342, 1.442695
  %v2363 = vpow.pop %v2362
  %v2364 = vmul.f32 %v2343, 1.442695
  %v2365 = vpow.pop %v2364
  %v2366 = vmul.f32 %v2344, 1.442695
  %v2367 = vpow.pop %v2366
  %v2368 = vmul.f32 %v2345, 1.442695
  %v2369 = vpow.pop %v2368
  %v2370 = vmul.f32 %v2346, 1.442695
  %v2371 = vpow.pop %v2370
  %v2372 = vmul.f32 %v2347, 1.442695
  %v2373 = vpow.pop %v2372
  %v2374 = vmul.f32 %v2348, 1.442695
  %v2375 = vpow.pop %v2374
  %v2376 = vmul.f32 %v2349, 1.442695
  %v2377 = vpow.pop %v2376
  %v2378 = vmul.f32 %v2350, 1.442695
  %v2379 = vpow.pop %v2378
  %v2380 = vmul.f32 %v2351, 1.442695
  %v2381 = vpow.pop %v2380
  %v2382 = vmul.f32 %v2352, 1.442695
  %v2383 = vpow.pop %v2382
  %v2384 = vmul.f32 %v2353, 1.442695
  %v2385 = vpow.pop %v2384
  %v2386 = vadd.f32 %v2355, 1.0
  %v2387 = vadd.f32 %v2357, 1.0
  %v2388 = vadd.f32 %v2359, 1.0
  %v2389 = vadd.f32 %v2361, 1.0
  %v2390 = vadd.f32 %v2363, 1.0
  %v2391 = vadd.f32 %v2365, 1.0
  %v2392 = vadd.f32 %v2367, 1.0
  %v2393 = vadd.f32 %v2369, 1.0
  %v2394 = vadd.f32 %v2371, 1.0
  %v2395 = vadd.f32 %v2373, 1.0
  %v2396 = vadd.f32 %v2375, 1.0
  %v2397 = vadd.f32 %v2377, 1.0
  %v2398 = vadd.f32 %v2379, 1.0
  %v2399 = vadd.f32 %v2381, 1.0
  %v2400 = vadd.f32 %v2383, 1.0
  %v2401 = vadd.f32 %v2385, 1.0
  %v2402 = vrcp.pop %v2386
  %v2403 = vmul.f32 1.0, %v2402
  %v2404 = vrcp.pop %v2387
  %v2405 = vmul.f32 1.0, %v2404
  %v2406 = vrcp.pop %v2388
  %v2407 = vmul.f32 1.0, %v2406
  %v2408 = vrcp.pop %v2389
  %v2409 = vmul.f32 1.0, %v2408
  %v2410 = vrcp.pop %v2390
  %v2411 = vmul.f32 1.0, %v2410
  %v2412 = vrcp.pop %v2391
  %v2413 = vmul.f32 1.0, %v2412
  %v2414 = vrcp.pop %v2392
  %v2415 = vmul.f32 1.0, %v2414
  %v2416 = vrcp.pop %v2393
  %v2417 = vmul.f32 1.0, %v2416
  %v2418 = vrcp.pop %v2394
  %v2419 = vmul.f32 1.0, %v2418
  %v2420 = vrcp.pop %v2395
  %v2421 = vmul.f32 1.0, %v2420
  %v2422 = vrcp.pop %v2396
  %v2423 = vmul.f32 1.0, %v2422
  %v2424 = vrcp.pop %v2397
  %v2425 = vmul.f32 1.0, %v2424
  %v2426 = vrcp.pop %v2398
  %v2427 = vmul.f32 1.0, %v2426
  %v2428 = vrcp.pop %v2399
  %v2429 = vmul.f32 1.0, %v2428
  %v2430 = vrcp.pop %v2400
  %v2431 = vmul.f32 1.0, %v2430
  %v2432 = vrcp.pop %v2401
  %v2433 = vmul.f32 1.0, %v2432
  %v2434 = vtanh.pop %v1546
  %v2435 = vtanh.pop %v1547
  %v2436 = vtanh.pop %v1548
  %v2437 = vtanh.pop %v1549
  %v2438 = vtanh.pop %v1550
  %v2439 = vtanh.pop %v1551
  %v2440 = vtanh.pop %v1552
  %v2441 = vtanh.pop %v1553
  %v2442 = vtanh.pop %v1554
  %v2443 = vtanh.pop %v1555
  %v2444 = vtanh.pop %v1556
  %v2445 = vtanh.pop %v1557
  %v2446 = vtanh.pop %v1558
  %v2447 = vtanh.pop %v1559
  %v2448 = vtanh.pop %v1560
  %v2449 = vtanh.pop %v1561
  %v2450 = vmul.f32 %v2403, %v2434
  %v2451 = vmul.f32 %v2405, %v2435
  %v2452 = vmul.f32 %v2407, %v2436
  %v2453 = vmul.f32 %v2409, %v2437
  %v2454 = vmul.f32 %v2411, %v2438
  %v2455 = vmul.f32 %v2413, %v2439
  %v2456 = vmul.f32 %v2415, %v2440
  %v2457 = vmul.f32 %v2417, %v2441
  %v2458 = vmul.f32 %v2419, %v2442
  %v2459 = vmul.f32 %v2421, %v2443
  %v2460 = vmul.f32 %v2423, %v2444
  %v2461 = vmul.f32 %v2425, %v2445
  %v2462 = vmul.f32 %v2427, %v2446
  %v2463 = vmul.f32 %v2429, %v2447
  %v2464 = vmul.f32 %v2431, %v2448
  %v2465 = vmul.f32 %v2433, %v2449
  %2466 = vst [vmem:[%s3] sm:$0xff] %v2450
  %2467 = vst [vmem:[%s3 + $0x8] sm:$0xff] %v2451
  %2468 = vst [vmem:[%s3 + $0x10] sm:$0xff] %v2452
  %2469 = vst [vmem:[%s3 + $0x18] sm:$0xff] %v2453
  %2470 = vst [vmem:[%s3 + $0x20] sm:$0xff] %v2454
  %2471 = vst [vmem:[%s3 + $0x28] sm:$0xff] %v2455
  %2472 = vst [vmem:[%s3 + $0x30] sm:$0xff] %v2456
  %2473 = vst [vmem:[%s3 + $0x38] sm:$0xff] %v2457
  %2474 = vst [vmem:[%s3 + $0x40] sm:$0xff] %v2458
  %2475 = vst [vmem:[%s3 + $0x48] sm:$0xff] %v2459
  %2476 = vst [vmem:[%s3 + $0x50] sm:$0xff] %v2460
  %2477 = vst [vmem:[%s3 + $0x58] sm:$0xff] %v2461
  %2478 = vst [vmem:[%s3 + $0x60] sm:$0xff] %v2462
  %2479 = vst [vmem:[%s3 + $0x68] sm:$0xff] %v2463
  %2480 = vst [vmem:[%s3 + $0x70] sm:$0xff] %v2464
  %2481 = vst [vmem:[%s3 + $0x78] sm:$0xff] %v2465
  // Predicated region
  $region14: #{conv_lstm_cell.1} parent=0 // pred_check
    _
  $region15: #{conv_lstm_cell.1} parent=0 // pred_check_branch
    %2483 = sbr.rel (0) target = $region17
  $region16: #{conv_lstm_cell.1} parent=0 // pred_region
    _
  $region17: #{conv_lstm_cell.1} parent=0 // pred_fallthru
    _
  // Predicated region
  $region18: #{conv_lstm_cell.1} parent=0 // pred_check
    _
  $region19: #{conv_lstm_cell.1} parent=0 // pred_check_branch
    %2485 = sbr.rel (0) target = $region21
  $region20: #{conv_lstm_cell.1} parent=0 // pred_region
    _
  $region21: #{conv_lstm_cell.1} parent=0 // pred_fallthru
    _
  // Predicated region
  $region22: #{conv_lstm_cell.1} parent=0 // pred_check
    _
  $region23: #{conv_lstm_cell.1} parent=0 // pred_check_branch
    %2487 = sbr.rel (0) target = $region25
  $region24: #{conv_lstm_cell.1} parent=0 // pred_region
    _
  $region25: #{conv_lstm_cell.1} parent=0 // pred_fallthru
    _
  // Predicated region
  $region26: #{conv_lstm_cell.1} parent=0 // pred_check
    _
  $region27: #{conv_lstm_cell.1} parent=0 // pred_check_branch
    %2489 = sbr.rel (0) target = $region29
  $region28: #{conv_lstm_cell.1} parent=0 // pred_region
    _
  $region29: #{conv_lstm_cell.1} parent=0 // pred_fallthru
    _

</llo_original>
